<compile_context>
chip_gen: v5e
topology: v5e:2x2
jax: 0.10.0
libtpu: 0.0.40
codegen_flags: <defaults>
</compile_context>

<pallas_src>
import numpy as np
import jax
import jax.numpy as jnp
from jax.experimental import pallas as pl
from jax.experimental.pallas import tpu as pltpu


def _round_up(v, m):
    return ((v + m - 1) // m) * m


# ----------------------------------------------------------------------------
# Kernel 1: LSTM recurrence + fused token-logit decoder, grid over batch tiles.
#   - hoisted input projection (one GEMM per tile, kept in VMEM scratch)
#   - fused gates [i|f|g|o]: single (tn, 4*Hh) matmul per step
#   - sigmoid via tanh (one EUP op), fori_loop with unroll
#   - only a lane-dense (tn, S) logits block is written to HBM
# ----------------------------------------------------------------------------
def lstm_logits_kernel(x_ref, wih_ref, whh_ref, b_ref, wt_ref, bt_ref,
                       logit_ref, xg_sc, lg_sc):
    tn, S, H = x_ref.shape
    Hh = whh_ref.shape[0]

    # Hoisted input projection, off the serial path:
    # (tn*S, H) @ (H, 4*Hh) in one MXU-friendly GEMM, result parked in VMEM.
    xg = jnp.dot(x_ref[...].reshape(tn * S, H), wih_ref[...],
                 preferred_element_type=jnp.float32) + b_ref[...]
    xg_sc[...] = xg.reshape(tn, S, 4 * Hh)

    whh = whh_ref[...]                       # (Hh, 4*Hh) fused gates [i|f|g|o]
    wt = wt_ref[...]                         # (1, Hh) token-logit weights

    # NOTE: MXU operands kept in f32 for accuracy across S recurrence steps
    # (bf16 cast is an optional v6e/v7x throughput knob).
    def sig(z):                              # sigmoid via tanh: single EUP push
        return 0.5 * (jnp.tanh(0.5 * z) + 1.0)

    def step(t, carry):
        h, c = carry
        g = (xg_sc[:, pl.ds(t, 1), :].reshape(tn, 4 * Hh)
             + jnp.dot(h, whh, preferred_element_type=jnp.float32))
        i = sig(g[:, 0 * Hh:1 * Hh])
        f = sig(g[:, 1 * Hh:2 * Hh])
        gg = jnp.tanh(g[:, 2 * Hh:3 * Hh])
        o = sig(g[:, 3 * Hh:4 * Hh])
        c = f * c + i * gg
        h = o * jnp.tanh(c)
        # Fused token logit h . w_tok, stored time-major: one lane-dense (1, tn)
        # VMEM store per step (no HBM hidden-state traffic at all).
        lg_sc[pl.ds(t, 1), :] = jnp.sum(h * wt, axis=-1)[None, :]
        return (h, c)

    carry0 = (jnp.zeros((tn, Hh), jnp.float32),
              jnp.zeros((tn, Hh), jnp.float32))
    jax.lax.fori_loop(0, S, step, carry0, unroll=min(8, S))

    # Single lane-dense (tn, S) HBM writeback; token bias added once here.
    logit_ref[...] = lg_sc[...].T + bt_ref[...]


def _pick_tile_n(N, S, H, Hh, vmem_budget_bytes=20 * 2**20, max_tile=256):
    # Resident f32 bytes per batch row: double-buffered x block, lane-padded xg
    # scratch, double-buffered (tn, S) logits output, (S, tn) logit scratch.
    lanes_4hh = _round_up(4 * Hh, 128)
    per_row = 4 * S * (2 * H + lanes_4hh + 2 + 1)
    cap = max(8, (vmem_budget_bytes // max(per_row, 1)) // 8 * 8)
    # Aim for >= 2 grid steps when possible so both v7x TensorCores get work.
    two_core = max(8, _round_up((N + 1) // 2, 8))
    return int(min(max_tile, cap, two_core, _round_up(N, 8)))


def lstm_token_logits(x, wih, whh, b_lstm, w_tok, b_tok):
    N, S, H = x.shape
    Hh = whh.shape[0]
    tn = _pick_tile_n(N, S, H, Hh)
    grid = (pl.cdiv(N, tn),)
    return pl.pallas_call(
        lstm_logits_kernel,
        out_shape=jax.ShapeDtypeStruct((N, S), jnp.float32),
        grid=grid,
        in_specs=[
            pl.BlockSpec((tn, S, H), lambda n: (n, 0, 0)),
            # Constant index_maps: weights are DMA'd once, not per grid step.
            pl.BlockSpec((H, 4 * Hh), lambda n: (0, 0)),
            pl.BlockSpec((Hh, 4 * Hh), lambda n: (0, 0)),
            pl.BlockSpec((1, 4 * Hh), lambda n: (0, 0)),
            pl.BlockSpec((1, Hh), lambda n: (0, 0)),
            pl.BlockSpec((1, 1), lambda n: (0, 0)),
        ],
        out_specs=pl.BlockSpec((tn, S), lambda n: (n, 0)),
        scratch_shapes=[
            pltpu.VMEM((tn, S, 4 * Hh), jnp.float32),   # hoisted gate pre-acts
            pltpu.VMEM((S, tn), jnp.float32),           # time-major token logits
        ],
        compiler_params=pltpu.CompilerParams(
            dimension_semantics=("parallel",),
            vmem_limit_bytes=32 * 1024 * 1024),
    )(x, wih, whh, b_lstm, w_tok, b_tok)


# ----------------------------------------------------------------------------
# Kernel 2: token softmax (length-masked) + weighted pooling + layer softmax +
# MLP, batched over TB batch elements per grid step.
# ----------------------------------------------------------------------------
def pool_mlp_kernel(lens_ref, logit_ref, x_ref, wl_ref, bl_ref,
                    w1_ref, b1_ref, w2_ref, b2_ref,
                    tw_ref, lw_ref, out_ref):
    TB, L, S = logit_ref.shape

    # Token softmax over S with padding mask (matches packed-sequence output).
    lens = lens_ref[...]                                      # (TB, 1) int32
    pos = jax.lax.broadcasted_iota(jnp.int32, (TB, L, S), 2)
    logits = jnp.where(pos >= lens[:, :, None], -jnp.inf, logit_ref[...])
    m = jnp.max(logits, axis=-1, keepdims=True)
    e = jnp.exp(logits - m)
    tw = e / jnp.sum(e, axis=-1, keepdims=True)               # exact (returned)
    tw_ref[...] = tw

    # Token-weighted pooling over S.
    # TODO(synk): for large S*H move this onto the MXU via a batched einsum.
    x = x_ref[...]                                            # (TB, L, S, H)
    layers = jnp.sum(x * tw[:, :, :, None], axis=2)           # (TB, L, H)

    # Layer logits + softmax over L.
    ll = jnp.sum(layers * wl_ref[...][None, :, :], axis=-1) + bl_ref[...]  # (TB, L)
    lm = jnp.max(ll, axis=-1, keepdims=True)
    le = jnp.exp(ll - lm)
    lw = le / jnp.sum(le, axis=-1, keepdims=True)
    lw_ref[...] = lw

    # Layer-weighted sum + MLP (Linear -> ReLU -> [dropout = identity] -> Linear),
    # now with M = TB rows on the MXU.
    final = jnp.sum(layers * lw[:, :, None], axis=1)          # (TB, H)
    h1 = jnp.maximum(
        jnp.dot(final, w1_ref[...], preferred_element_type=jnp.float32)
        + b1_ref[...], 0.0)
    out_ref[...] = (jnp.dot(h1, w2_ref[...], preferred_element_type=jnp.float32)
                    + b2_ref[...])


def _pick_tile_b(B, L, S, H, vmem_budget_bytes=20 * 2**20, max_tb=64):
    per_b = 4 * L * S * (2 * H + 2 + 2) + 4 * L * (H + 4)
    cap = max(1, vmem_budget_bytes // max(per_b, 1))
    tb = min(B, max_tb, cap)
    if tb < B:
        tb = max(8, (tb // 8) * 8)   # keep (TB, *) blocks sublane-aligned
    return int(tb)


def pool_mlp_forward(logits, x, lens, w_layer, b_layer, w1, b1, w2, b2):
    B, L, S = logits.shape
    H = x.shape[-1]
    Hh = w1.shape[-1]
    O = w2.shape[-1]
    TB = _pick_tile_b(B, L, S, H)
    grid = (pl.cdiv(B, TB),)
    const2 = lambda b: (0, 0)
    return pl.pallas_call(
        pool_mlp_kernel,
        out_shape=(jax.ShapeDtypeStruct((B, L, S), jnp.float32),
                   jax.ShapeDtypeStruct((B, L), jnp.float32),
                   jax.ShapeDtypeStruct((B, O), jnp.float32)),
        grid=grid,
        in_specs=[
            pl.BlockSpec((TB, 1), lambda b: (b, 0)),
            pl.BlockSpec((TB, L, S), lambda b: (b, 0, 0)),
            pl.BlockSpec((TB, L, S, H), lambda b: (b, 0, 0, 0)),
            pl.BlockSpec((1, H), const2),
            pl.BlockSpec((1, 1), const2),
            pl.BlockSpec((H, Hh), const2),
            pl.BlockSpec((1, Hh), const2),
            pl.BlockSpec((Hh, O), const2),
            pl.BlockSpec((1, O), const2),
        ],
        out_specs=(
            pl.BlockSpec((TB, L, S), lambda b: (b, 0, 0)),
            pl.BlockSpec((TB, L), lambda b: (b, 0)),
            pl.BlockSpec((TB, O), lambda b: (b, 0)),
        ),
        compiler_params=pltpu.CompilerParams(
            dimension_semantics=("parallel",),
            vmem_limit_bytes=32 * 1024 * 1024),
    )(lens, logits, x, w_layer, b_layer, w1, b1, w2, b2)


# ----------------------------------------------------------------------------
# Full forward pass (wrapper glue: only free reshapes/slices, no transposes).
# ----------------------------------------------------------------------------
def rnn_mlp_forward(input_hidden, sentence_lengths, p):
    B, L, S, H = input_hidden.shape
    N = B * L
    lens_np = np.asarray(sentence_lengths).astype(np.int32)
    S_max = int(lens_np.max())
    # Bucket the run length (multiple of 8) to bound recompiles across batches
    # with different max lengths; masked positions get exactly 0 softmax weight
    # so slicing back to S_max below is exact.
    S_run = min(S, _round_up(S_max, 8))

    x = input_hidden.reshape(N, S, H)[:, :S_run, :]           # (N, S_run, H)
    logits = lstm_token_logits(x, p["wih"], p["whh"], p["b_lstm"],
                               p["w_tok"], p["b_tok"])        # (N, S_run)

    lens = jnp.asarray(lens_np).reshape(B, 1)                 # (B, 1) int32
    tw, lw, out = pool_mlp_forward(
        logits.reshape(B, L, S_run), x.reshape(B, L, S_run, H), lens,
        p["w_layer"], p["b_layer"], p["w1"], p["b1"], p["w2"], p["b2"])

    token_weights = tw.reshape(N, S_run)[:, :S_max]           # (N, S_max)
    layer_weights = lw[:, :, None]                            # (B, L, 1)
    return token_weights, layer_weights, out                  # out: (B, O)


# ----------------------------------------------------------------------------
# Deterministic synthetic parameter init (PyTorch-style uniform(-1/sqrt(fan), .)).
# Gate layout: [i | f | g | o] along the fused 4*Hh axis; b_lstm = b_ih + b_hh.
# ----------------------------------------------------------------------------
def init_params(key, input_size, hidden_size, output_size):
    ks = jax.random.split(key, 11)

    def u(k, shape, fan):
        b = 1.0 / np.sqrt(fan)
        return jax.random.uniform(k, shape, jnp.float32, -b, b)

    return dict(
        wih=u(ks[0], (input_size, 4 * hidden_size), hidden_size),
        whh=u(ks[1], (hidden_size, 4 * hidden_size), hidden_size),
        b_lstm=u(ks[2], (1, 4 * hidden_size), hidden_size),
        w_tok=u(ks[3], (1, hidden_size), hidden_size),
        b_tok=u(ks[4], (1, 1), hidden_size),
        w_layer=u(ks[5], (1, input_size), input_size),
        b_layer=u(ks[6], (1, 1), input_size),
        w1=u(ks[7], (input_size, hidden_size), input_size),
        b1=u(ks[8], (1, hidden_size), input_size),
        w2=u(ks[9], (hidden_size, output_size), hidden_size),
        b2=u(ks[10], (1, output_size), hidden_size),
    )


# ----------------------------------------------------------------------------
# Pure-JAX reference (for numerical sanity check).
# ----------------------------------------------------------------------------
def reference_forward(input_hidden, sentence_lengths, p):
    B, L, S, H = input_hidden.shape
    N = B * L
    Hh = p["whh"].shape[0]
    lens_np = np.asarray(sentence_lengths)
    S_max = int(lens_np.max())
    lens_rep = jnp.asarray(np.repeat(lens_np.astype(np.int32), L))

    x = input_hidden.reshape(N, S, H)[:, :S_max, :]
    x_tm = jnp.transpose(x, (1, 0, 2))

    def step(carry, x_t):
        h, c = carry
        g = x_t @ p["wih"] + h @ p["whh"] + p["b_lstm"]
        i = jax.nn.sigmoid(g[:, 0 * Hh:1 * Hh])
        f = jax.nn.sigmoid(g[:, 1 * Hh:2 * Hh])
        gg = jnp.tanh(g[:, 2 * Hh:3 * Hh])
        o = jax.nn.sigmoid(g[:, 3 * Hh:4 * Hh])
        c = f * c + i * gg
        h = o * jnp.tanh(c)
        return (h, c), h

    init = (jnp.zeros((N, Hh), jnp.float32), jnp.zeros((N, Hh), jnp.float32))
    _, hid_tm = jax.lax.scan(step, init, x_tm)
    hid = jnp.transpose(hid_tm, (1, 0, 2))

    logits = jnp.einsum("nsh,h->ns", hid, p["w_tok"][0]) + p["b_tok"][0, 0]
    pos = jnp.arange(S_max)[None, :]
    logits = jnp.where(pos >= lens_rep[:, None], -jnp.inf, logits)
    tw = jax.nn.softmax(logits, axis=1)

    layers = jnp.sum(x * tw[:, :, None], axis=1).reshape(B, L, H)
    llogit = jnp.einsum("blh,h->bl", layers, p["w_layer"][0]) + p["b_layer"][0, 0]
    lw = jax.nn.softmax(llogit, axis=1)
    final = jnp.sum(layers * lw[:, :, None], axis=1)
    h1 = jnp.maximum(final @ p["w1"] + p["b1"], 0.0)
    out = h1 @ p["w2"] + p["b2"]
    return tw, lw[:, :, None], out


if __name__ == "__main__":
    B, L, S = 2, 4, 8
    input_size, hidden_size, output_size = 32, 32, 8

    key = jax.random.PRNGKey(0)
    k_in, k_par = jax.random.split(key)
    input_hidden = jax.random.normal(k_in, (B, L, S, input_size), jnp.float32)
    sentence_lengths = np.array([8, 5], dtype=np.int32)   # lengths >= 1 assumed
    params = init_params(k_par, input_size, hidden_size, output_size)

    tw, lw, mlp_out = rnn_mlp_forward(input_hidden, sentence_lengths, params)
    jax.block_until_ready((tw, lw, mlp_out))

    tw_r, lw_r, out_r = reference_forward(input_hidden, sentence_lengths, params)
    np.testing.assert_allclose(np.asarray(tw), np.asarray(tw_r), rtol=2e-2, atol=2e-2)
    np.testing.assert_allclose(np.asarray(lw), np.asarray(lw_r), rtol=2e-2, atol=2e-2)
    np.testing.assert_allclose(np.asarray(mlp_out), np.asarray(out_r), rtol=2e-2, atol=2e-2)

    print("KERNEL_OK")
</pallas_src>

<mosaic_0001>
module attributes {stable_mosaic.version = 11 : i64} {
  func.func @lstm_logits_kernel(%arg0: i32, %arg1: memref<8x8x32xf32, #tpu.memory_space<vmem>>, %arg2: memref<32x128xf32, #tpu.memory_space<vmem>>, %arg3: memref<32x128xf32, #tpu.memory_space<vmem>>, %arg4: memref<1x128xf32, #tpu.memory_space<vmem>>, %arg5: memref<1x32xf32, #tpu.memory_space<vmem>>, %arg6: memref<1x1xf32, #tpu.memory_space<vmem>>, %arg7: memref<8x8xf32, #tpu.memory_space<vmem>>, %arg8: memref<8x8x128xf32, #tpu.memory_space<vmem>>, %arg9: memref<8x8xf32, #tpu.memory_space<vmem>>) attributes {dimension_semantics = [#tpu.dimension_semantics<parallel>], iteration_bounds = array<i64: 1>, scalar_prefetch = 0 : i64, scratch_operands = 2 : i64, tpu.core_type = #tpu.core_type<tc>, window_params = [{transform_indices = @transform_0, window_bounds = array<i64: 8, 8, 32>}, {pipeline_mode = #tpu.pipeline_mode<synchronous>, transform_indices = @transform_1, window_bounds = array<i64: 32, 128>}, {pipeline_mode = #tpu.pipeline_mode<synchronous>, transform_indices = @transform_2, window_bounds = array<i64: 32, 128>}, {pipeline_mode = #tpu.pipeline_mode<synchronous>, transform_indices = @transform_3, window_bounds = array<i64: 1, 128>}, {pipeline_mode = #tpu.pipeline_mode<synchronous>, transform_indices = @transform_4, window_bounds = array<i64: 1, 32>}, {pipeline_mode = #tpu.pipeline_mode<synchronous>, transform_indices = @transform_5, window_bounds = array<i64: 1, 1>}, {transform_indices = @transform_6, window_bounds = array<i64: 8, 8>}]} {
    %c0 = arith.constant 0 : index
    %c0_0 = arith.constant 0 : index
    %c0_1 = arith.constant 0 : index
    %0 = vector.load %arg1[%c0, %c0_0, %c0_1] : memref<8x8x32xf32, #tpu.memory_space<vmem>>, vector<8x8x32xf32>
    %1 = vector.shape_cast %0 : vector<8x8x32xf32> to vector<64x32xf32>
    %c0_2 = arith.constant 0 : index
    %c0_3 = arith.constant 0 : index
    %2 = vector.load %arg2[%c0_2, %c0_3] : memref<32x128xf32, #tpu.memory_space<vmem>>, vector<32x128xf32>
    %cst = arith.constant dense<0.000000e+00> : vector<64x128xf32>
    %3 = tpu.matmul %1, %2, %cst {dimension_numbers = #tpu.dot_dimension_numbers<[1], [0], [0], [1], [0, 0, 1, 1], [], []>} : vector<64x32xf32>, vector<32x128xf32>, vector<64x128xf32> -> vector<64x128xf32>
    %c0_4 = arith.constant 0 : index
    %c0_5 = arith.constant 0 : index
    %4 = vector.load %arg4[%c0_4, %c0_5] : memref<1x128xf32, #tpu.memory_space<vmem>>, vector<1x128xf32>
    %5 = vector.broadcast %4 : vector<1x128xf32> to vector<64x128xf32>
    %6 = arith.addf %3, %5 : vector<64x128xf32>
    %7 = vector.shape_cast %6 : vector<64x128xf32> to vector<8x8x128xf32>
    %c0_6 = arith.constant 0 : index
    %c0_7 = arith.constant 0 : index
    %c0_8 = arith.constant 0 : index
    %8 = vector.load %arg8[%c0_6, %c0_7, %c0_8] : memref<8x8x128xf32, #tpu.memory_space<vmem>>, vector<8x8x128xf32>
    tpu.vector_store %arg8[%c0_6, %c0_7, %c0_8], %7 {strides = array<i32>} : memref<8x8x128xf32, #tpu.memory_space<vmem>>, vector<8x8x128xf32>,
    %c0_9 = arith.constant 0 : index
    %c0_10 = arith.constant 0 : index
    %9 = vector.load %arg3[%c0_9, %c0_10] : memref<32x128xf32, #tpu.memory_space<vmem>>, vector<32x128xf32>
    %c0_11 = arith.constant 0 : index
    %c0_12 = arith.constant 0 : index
    %10 = vector.load %arg5[%c0_11, %c0_12] : memref<1x32xf32, #tpu.memory_space<vmem>>, vector<1x32xf32>
    %cst_13 = arith.constant 0.000000e+00 : f32
    %11 = vector.broadcast %cst_13 : f32 to vector<8x32xf32>
    %cst_14 = arith.constant 0.000000e+00 : f32
    %12 = vector.broadcast %cst_14 : f32 to vector<8x32xf32>
    %c0_i32 = arith.constant 0 : i32
    %c0_15 = arith.constant 0 : index
    %13 = arith.index_cast %c0_i32 : i32 to index
    %c0_16 = arith.constant 0 : index
    %14 = vector.load %arg8[%c0_15, %13, %c0_16] : memref<8x8x128xf32, #tpu.memory_space<vmem>>, vector<8x1x128xf32>
    %15 = vector.shape_cast %14 : vector<8x1x128xf32> to vector<8x128xf32>
    %cst_17 = arith.constant dense<0.000000e+00> : vector<8x128xf32>
    %16 = tpu.matmul %11, %9, %cst_17 {dimension_numbers = #tpu.dot_dimension_numbers<[1], [0], [0], [1], [0, 0, 1, 1], [], []>} : vector<8x32xf32>, vector<32x128xf32>, vector<8x128xf32> -> vector<8x128xf32>
    %17 = arith.addf %15, %16 : vector<8x128xf32>
    %18 = vector.extract_strided_slice %17 {offsets = [0, 0], sizes = [8, 32], strides = [1, 1]} : vector<8x128xf32> to vector<8x32xf32>
    %cst_18 = arith.constant 5.000000e-01 : f32
    %19 = vector.broadcast %cst_18 : f32 to vector<8x32xf32>
    %20 = arith.mulf %19, %18 : vector<8x32xf32>
    %21 = math.tanh %20 : vector<8x32xf32>
    %cst_19 = arith.constant 1.000000e+00 : f32
    %22 = vector.broadcast %cst_19 : f32 to vector<8x32xf32>
    %23 = arith.addf %21, %22 : vector<8x32xf32>
    %cst_20 = arith.constant 5.000000e-01 : f32
    %24 = vector.broadcast %cst_20 : f32 to vector<8x32xf32>
    %25 = arith.mulf %24, %23 : vector<8x32xf32>
    %26 = vector.extract_strided_slice %17 {offsets = [0, 32], sizes = [8, 32], strides = [1, 1]} : vector<8x128xf32> to vector<8x32xf32>
    %cst_21 = arith.constant 5.000000e-01 : f32
    %27 = vector.broadcast %cst_21 : f32 to vector<8x32xf32>
    %28 = arith.mulf %27, %26 : vector<8x32xf32>
    %29 = math.tanh %28 : vector<8x32xf32>
    %cst_22 = arith.constant 1.000000e+00 : f32
    %30 = vector.broadcast %cst_22 : f32 to vector<8x32xf32>
    %31 = arith.addf %29, %30 : vector<8x32xf32>
    %cst_23 = arith.constant 5.000000e-01 : f32
    %32 = vector.broadcast %cst_23 : f32 to vector<8x32xf32>
    %33 = arith.mulf %32, %31 : vector<8x32xf32>
    %34 = vector.extract_strided_slice %17 {offsets = [0, 64], sizes = [8, 32], strides = [1, 1]} : vector<8x128xf32> to vector<8x32xf32>
    %35 = math.tanh %34 : vector<8x32xf32>
    %36 = vector.extract_strided_slice %17 {offsets = [0, 96], sizes = [8, 32], strides = [1, 1]} : vector<8x128xf32> to vector<8x32xf32>
    %cst_24 = arith.constant 5.000000e-01 : f32
    %37 = vector.broadcast %cst_24 : f32 to vector<8x32xf32>
    %38 = arith.mulf %37, %36 : vector<8x32xf32>
    %39 = math.tanh %38 : vector<8x32xf32>
    %cst_25 = arith.constant 1.000000e+00 : f32
    %40 = vector.broadcast %cst_25 : f32 to vector<8x32xf32>
    %41 = arith.addf %39, %40 : vector<8x32xf32>
    %cst_26 = arith.constant 5.000000e-01 : f32
    %42 = vector.broadcast %cst_26 : f32 to vector<8x32xf32>
    %43 = arith.mulf %42, %41 : vector<8x32xf32>
    %44 = arith.mulf %33, %12 : vector<8x32xf32>
    %45 = arith.mulf %25, %35 : vector<8x32xf32>
    %46 = arith.addf %44, %45 : vector<8x32xf32>
    %47 = math.tanh %46 : vector<8x32xf32>
    %48 = arith.mulf %43, %47 : vector<8x32xf32>
    %49 = vector.broadcast %10 : vector<1x32xf32> to vector<8x32xf32>
    %50 = arith.mulf %48, %49 : vector<8x32xf32>
    %cst_27 = arith.constant dense<0.000000e+00> : vector<8xf32>
    %51 = vector.multi_reduction <add>, %50, %cst_27 [1] : vector<8x32xf32> to vector<8xf32>
    %52 = vector.shape_cast %51 : vector<8xf32> to vector<1x8xf32>
    %53 = arith.index_cast %c0_i32 : i32 to index
    %c0_28 = arith.constant 0 : index
    %54 = vector.load %arg9[%53, %c0_28] : memref<8x8xf32, #tpu.memory_space<vmem>>, vector<1x8xf32>
    tpu.vector_store %arg9[%53, %c0_28], %52 {strides = array<i32>} : memref<8x8xf32, #tpu.memory_space<vmem>>, vector<1x8xf32>,
    %c1_i32 = arith.constant 1 : i32
    %c0_29 = arith.constant 0 : index
    %55 = arith.index_cast %c1_i32 : i32 to index
    %c0_30 = arith.constant 0 : index
    %56 = vector.load %arg8[%c0_29, %55, %c0_30] : memref<8x8x128xf32, #tpu.memory_space<vmem>>, vector<8x1x128xf32>
    %57 = vector.shape_cast %56 : vector<8x1x128xf32> to vector<8x128xf32>
    %cst_31 = arith.constant dense<0.000000e+00> : vector<8x128xf32>
    %58 = tpu.matmul %48, %9, %cst_31 {dimension_numbers = #tpu.dot_dimension_numbers<[1], [0], [0], [1], [0, 0, 1, 1], [], []>} : vector<8x32xf32>, vector<32x128xf32>, vector<8x128xf32> -> vector<8x128xf32>
    %59 = arith.addf %57, %58 : vector<8x128xf32>
    %60 = vector.extract_strided_slice %59 {offsets = [0, 0], sizes = [8, 32], strides = [1, 1]} : vector<8x128xf32> to vector<8x32xf32>
    %cst_32 = arith.constant 5.000000e-01 : f32
    %61 = vector.broadcast %cst_32 : f32 to vector<8x32xf32>
    %62 = arith.mulf %61, %60 : vector<8x32xf32>
    %63 = math.tanh %62 : vector<8x32xf32>
    %cst_33 = arith.constant 1.000000e+00 : f32
    %64 = vector.broadcast %cst_33 : f32 to vector<8x32xf32>
    %65 = arith.addf %63, %64 : vector<8x32xf32>
    %cst_34 = arith.constant 5.000000e-01 : f32
    %66 = vector.broadcast %cst_34 : f32 to vector<8x32xf32>
    %67 = arith.mulf %66, %65 : vector<8x32xf32>
    %68 = vector.extract_strided_slice %59 {offsets = [0, 32], sizes = [8, 32], strides = [1, 1]} : vector<8x128xf32> to vector<8x32xf32>
    %cst_35 = arith.constant 5.000000e-01 : f32
    %69 = vector.broadcast %cst_35 : f32 to vector<8x32xf32>
    %70 = arith.mulf %69, %68 : vector<8x32xf32>
    %71 = math.tanh %70 : vector<8x32xf32>
    %cst_36 = arith.constant 1.000000e+00 : f32
    %72 = vector.broadcast %cst_36 : f32 to vector<8x32xf32>
    %73 = arith.addf %71, %72 : vector<8x32xf32>
    %cst_37 = arith.constant 5.000000e-01 : f32
    %74 = vector.broadcast %cst_37 : f32 to vector<8x32xf32>
    %75 = arith.mulf %74, %73 : vector<8x32xf32>
    %76 = vector.extract_strided_slice %59 {offsets = [0, 64], sizes = [8, 32], strides = [1, 1]} : vector<8x128xf32> to vector<8x32xf32>
    %77 = math.tanh %76 : vector<8x32xf32>
    %78 = vector.extract_strided_slice %59 {offsets = [0, 96], sizes = [8, 32], strides = [1, 1]} : vector<8x128xf32> to vector<8x32xf32>
    %cst_38 = arith.constant 5.000000e-01 : f32
    %79 = vector.broadcast %cst_38 : f32 to vector<8x32xf32>
    %80 = arith.mulf %79, %78 : vector<8x32xf32>
    %81 = math.tanh %80 : vector<8x32xf32>
    %cst_39 = arith.constant 1.000000e+00 : f32
    %82 = vector.broadcast %cst_39 : f32 to vector<8x32xf32>
    %83 = arith.addf %81, %82 : vector<8x32xf32>
    %cst_40 = arith.constant 5.000000e-01 : f32
    %84 = vector.broadcast %cst_40 : f32 to vector<8x32xf32>
    %85 = arith.mulf %84, %83 : vector<8x32xf32>
    %86 = arith.mulf %75, %46 : vector<8x32xf32>
    %87 = arith.mulf %67, %77 : vector<8x32xf32>
    %88 = arith.addf %86, %87 : vector<8x32xf32>
    %89 = math.tanh %88 : vector<8x32xf32>
    %90 = arith.mulf %85, %89 : vector<8x32xf32>
    %91 = vector.broadcast %10 : vector<1x32xf32> to vector<8x32xf32>
    %92 = arith.mulf %90, %91 : vector<8x32xf32>
    %cst_41 = arith.constant dense<0.000000e+00> : vector<8xf32>
    %93 = vector.multi_reduction <add>, %92, %cst_41 [1] : vector<8x32xf32> to vector<8xf32>
    %94 = vector.shape_cast %93 : vector<8xf32> to vector<1x8xf32>
    %95 = arith.index_cast %c1_i32 : i32 to index
    %c0_42 = arith.constant 0 : index
    %96 = vector.load %arg9[%95, %c0_42] : memref<8x8xf32, #tpu.memory_space<vmem>>, vector<1x8xf32>
    tpu.vector_store %arg9[%95, %c0_42], %94 {strides = array<i32>} : memref<8x8xf32, #tpu.memory_space<vmem>>, vector<1x8xf32>,
    %c2_i32 = arith.constant 2 : i32
    %c0_43 = arith.constant 0 : index
    %97 = arith.index_cast %c2_i32 : i32 to index
    %c0_44 = arith.constant 0 : index
    %98 = vector.load %arg8[%c0_43, %97, %c0_44] : memref<8x8x128xf32, #tpu.memory_space<vmem>>, vector<8x1x128xf32>
    %99 = vector.shape_cast %98 : vector<8x1x128xf32> to vector<8x128xf32>
    %cst_45 = arith.constant dense<0.000000e+00> : vector<8x128xf32>
    %100 = tpu.matmul %90, %9, %cst_45 {dimension_numbers = #tpu.dot_dimension_numbers<[1], [0], [0], [1], [0, 0, 1, 1], [], []>} : vector<8x32xf32>, vector<32x128xf32>, vector<8x128xf32> -> vector<8x128xf32>
    %101 = arith.addf %99, %100 : vector<8x128xf32>
    %102 = vector.extract_strided_slice %101 {offsets = [0, 0], sizes = [8, 32], strides = [1, 1]} : vector<8x128xf32> to vector<8x32xf32>
    %cst_46 = arith.constant 5.000000e-01 : f32
    %103 = vector.broadcast %cst_46 : f32 to vector<8x32xf32>
    %104 = arith.mulf %103, %102 : vector<8x32xf32>
    %105 = math.tanh %104 : vector<8x32xf32>
    %cst_47 = arith.constant 1.000000e+00 : f32
    %106 = vector.broadcast %cst_47 : f32 to vector<8x32xf32>
    %107 = arith.addf %105, %106 : vector<8x32xf32>
    %cst_48 = arith.constant 5.000000e-01 : f32
    %108 = vector.broadcast %cst_48 : f32 to vector<8x32xf32>
    %109 = arith.mulf %108, %107 : vector<8x32xf32>
    %110 = vector.extract_strided_slice %101 {offsets = [0, 32], sizes = [8, 32], strides = [1, 1]} : vector<8x128xf32> to vector<8x32xf32>
    %cst_49 = arith.constant 5.000000e-01 : f32
    %111 = vector.broadcast %cst_49 : f32 to vector<8x32xf32>
    %112 = arith.mulf %111, %110 : vector<8x32xf32>
    %113 = math.tanh %112 : vector<8x32xf32>
    %cst_50 = arith.constant 1.000000e+00 : f32
    %114 = vector.broadcast %cst_50 : f32 to vector<8x32xf32>
    %115 = arith.addf %113, %114 : vector<8x32xf32>
    %cst_51 = arith.constant 5.000000e-01 : f32
    %116 = vector.broadcast %cst_51 : f32 to vector<8x32xf32>
    %117 = arith.mulf %116, %115 : vector<8x32xf32>
    %118 = vector.extract_strided_slice %101 {offsets = [0, 64], sizes = [8, 32], strides = [1, 1]} : vector<8x128xf32> to vector<8x32xf32>
    %119 = math.tanh %118 : vector<8x32xf32>
    %120 = vector.extract_strided_slice %101 {offsets = [0, 96], sizes = [8, 32], strides = [1, 1]} : vector<8x128xf32> to vector<8x32xf32>
    %cst_52 = arith.constant 5.000000e-01 : f32
    %121 = vector.broadcast %cst_52 : f32 to vector<8x32xf32>
    %122 = arith.mulf %121, %120 : vector<8x32xf32>
    %123 = math.tanh %122 : vector<8x32xf32>
    %cst_53 = arith.constant 1.000000e+00 : f32
    %124 = vector.broadcast %cst_53 : f32 to vector<8x32xf32>
    %125 = arith.addf %123, %124 : vector<8x32xf32>
    %cst_54 = arith.constant 5.000000e-01 : f32
    %126 = vector.broadcast %cst_54 : f32 to vector<8x32xf32>
    %127 = arith.mulf %126, %125 : vector<8x32xf32>
    %128 = arith.mulf %117, %88 : vector<8x32xf32>
    %129 = arith.mulf %109, %119 : vector<8x32xf32>
    %130 = arith.addf %128, %129 : vector<8x32xf32>
    %131 = math.tanh %130 : vector<8x32xf32>
    %132 = arith.mulf %127, %131 : vector<8x32xf32>
    %133 = vector.broadcast %10 : vector<1x32xf32> to vector<8x32xf32>
    %134 = arith.mulf %132, %133 : vector<8x32xf32>
    %cst_55 = arith.constant dense<0.000000e+00> : vector<8xf32>
    %135 = vector.multi_reduction <add>, %134, %cst_55 [1] : vector<8x32xf32> to vector<8xf32>
    %136 = vector.shape_cast %135 : vector<8xf32> to vector<1x8xf32>
    %137 = arith.index_cast %c2_i32 : i32 to index
    %c0_56 = arith.constant 0 : index
    %138 = vector.load %arg9[%137, %c0_56] : memref<8x8xf32, #tpu.memory_space<vmem>>, vector<1x8xf32>
    tpu.vector_store %arg9[%137, %c0_56], %136 {strides = array<i32>} : memref<8x8xf32, #tpu.memory_space<vmem>>, vector<1x8xf32>,
    %c3_i32 = arith.constant 3 : i32
    %c0_57 = arith.constant 0 : index
    %139 = arith.index_cast %c3_i32 : i32 to index
    %c0_58 = arith.constant 0 : index
    %140 = vector.load %arg8[%c0_57, %139, %c0_58] : memref<8x8x128xf32, #tpu.memory_space<vmem>>, vector<8x1x128xf32>
    %141 = vector.shape_cast %140 : vector<8x1x128xf32> to vector<8x128xf32>
    %cst_59 = arith.constant dense<0.000000e+00> : vector<8x128xf32>
    %142 = tpu.matmul %132, %9, %cst_59 {dimension_numbers = #tpu.dot_dimension_numbers<[1], [0], [0], [1], [0, 0, 1, 1], [], []>} : vector<8x32xf32>, vector<32x128xf32>, vector<8x128xf32> -> vector<8x128xf32>
    %143 = arith.addf %141, %142 : vector<8x128xf32>
    %144 = vector.extract_strided_slice %143 {offsets = [0, 0], sizes = [8, 32], strides = [1, 1]} : vector<8x128xf32> to vector<8x32xf32>
    %cst_60 = arith.constant 5.000000e-01 : f32
    %145 = vector.broadcast %cst_60 : f32 to vector<8x32xf32>
    %146 = arith.mulf %145, %144 : vector<8x32xf32>
    %147 = math.tanh %146 : vector<8x32xf32>
    %cst_61 = arith.constant 1.000000e+00 : f32
    %148 = vector.broadcast %cst_61 : f32 to vector<8x32xf32>
    %149 = arith.addf %147, %148 : vector<8x32xf32>
    %cst_62 = arith.constant 5.000000e-01 : f32
    %150 = vector.broadcast %cst_62 : f32 to vector<8x32xf32>
    %151 = arith.mulf %150, %149 : vector<8x32xf32>
    %152 = vector.extract_strided_slice %143 {offsets = [0, 32], sizes = [8, 32], strides = [1, 1]} : vector<8x128xf32> to vector<8x32xf32>
    %cst_63 = arith.constant 5.000000e-01 : f32
    %153 = vector.broadcast %cst_63 : f32 to vector<8x32xf32>
    %154 = arith.mulf %153, %152 : vector<8x32xf32>
    %155 = math.tanh %154 : vector<8x32xf32>
    %cst_64 = arith.constant 1.000000e+00 : f32
    %156 = vector.broadcast %cst_64 : f32 to vector<8x32xf32>
    %157 = arith.addf %155, %156 : vector<8x32xf32>
    %cst_65 = arith.constant 5.000000e-01 : f32
    %158 = vector.broadcast %cst_65 : f32 to vector<8x32xf32>
    %159 = arith.mulf %158, %157 : vector<8x32xf32>
    %160 = vector.extract_strided_slice %143 {offsets = [0, 64], sizes = [8, 32], strides = [1, 1]} : vector<8x128xf32> to vector<8x32xf32>
    %161 = math.tanh %160 : vector<8x32xf32>
    %162 = vector.extract_strided_slice %143 {offsets = [0, 96], sizes = [8, 32], strides = [1, 1]} : vector<8x128xf32> to vector<8x32xf32>
    %cst_66 = arith.constant 5.000000e-01 : f32
    %163 = vector.broadcast %cst_66 : f32 to vector<8x32xf32>
    %164 = arith.mulf %163, %162 : vector<8x32xf32>
    %165 = math.tanh %164 : vector<8x32xf32>
    %cst_67 = arith.constant 1.000000e+00 : f32
    %166 = vector.broadcast %cst_67 : f32 to vector<8x32xf32>
    %167 = arith.addf %165, %166 : vector<8x32xf32>
    %cst_68 = arith.constant 5.000000e-01 : f32
    %168 = vector.broadcast %cst_68 : f32 to vector<8x32xf32>
    %169 = arith.mulf %168, %167 : vector<8x32xf32>
    %170 = arith.mulf %159, %130 : vector<8x32xf32>
    %171 = arith.mulf %151, %161 : vector<8x32xf32>
    %172 = arith.addf %170, %171 : vector<8x32xf32>
    %173 = math.tanh %172 : vector<8x32xf32>
    %174 = arith.mulf %169, %173 : vector<8x32xf32>
    %175 = vector.broadcast %10 : vector<1x32xf32> to vector<8x32xf32>
    %176 = arith.mulf %174, %175 : vector<8x32xf32>
    %cst_69 = arith.constant dense<0.000000e+00> : vector<8xf32>
    %177 = vector.multi_reduction <add>, %176, %cst_69 [1] : vector<8x32xf32> to vector<8xf32>
    %178 = vector.shape_cast %177 : vector<8xf32> to vector<1x8xf32>
    %179 = arith.index_cast %c3_i32 : i32 to index
    %c0_70 = arith.constant 0 : index
    %180 = vector.load %arg9[%179, %c0_70] : memref<8x8xf32, #tpu.memory_space<vmem>>, vector<1x8xf32>
    tpu.vector_store %arg9[%179, %c0_70], %178 {strides = array<i32>} : memref<8x8xf32, #tpu.memory_space<vmem>>, vector<1x8xf32>,
    %c4_i32 = arith.constant 4 : i32
    %c0_71 = arith.constant 0 : index
    %181 = arith.index_cast %c4_i32 : i32 to index
    %c0_72 = arith.constant 0 : index
    %182 = vector.load %arg8[%c0_71, %181, %c0_72] : memref<8x8x128xf32, #tpu.memory_space<vmem>>, vector<8x1x128xf32>
    %183 = vector.shape_cast %182 : vector<8x1x128xf32> to vector<8x128xf32>
    %cst_73 = arith.constant dense<0.000000e+00> : vector<8x128xf32>
    %184 = tpu.matmul %174, %9, %cst_73 {dimension_numbers = #tpu.dot_dimension_numbers<[1], [0], [0], [1], [0, 0, 1, 1], [], []>} : vector<8x32xf32>, vector<32x128xf32>, vector<8x128xf32> -> vector<8x128xf32>
    %185 = arith.addf %183, %184 : vector<8x128xf32>
    %186 = vector.extract_strided_slice %185 {offsets = [0, 0], sizes = [8, 32], strides = [1, 1]} : vector<8x128xf32> to vector<8x32xf32>
    %cst_74 = arith.constant 5.000000e-01 : f32
    %187 = vector.broadcast %cst_74 : f32 to vector<8x32xf32>
    %188 = arith.mulf %187, %186 : vector<8x32xf32>
    %189 = math.tanh %188 : vector<8x32xf32>
    %cst_75 = arith.constant 1.000000e+00 : f32
    %190 = vector.broadcast %cst_75 : f32 to vector<8x32xf32>
    %191 = arith.addf %189, %190 : vector<8x32xf32>
    %cst_76 = arith.constant 5.000000e-01 : f32
    %192 = vector.broadcast %cst_76 : f32 to vector<8x32xf32>
    %193 = arith.mulf %192, %191 : vector<8x32xf32>
    %194 = vector.extract_strided_slice %185 {offsets = [0, 32], sizes = [8, 32], strides = [1, 1]} : vector<8x128xf32> to vector<8x32xf32>
    %cst_77 = arith.constant 5.000000e-01 : f32
    %195 = vector.broadcast %cst_77 : f32 to vector<8x32xf32>
    %196 = arith.mulf %195, %194 : vector<8x32xf32>
    %197 = math.tanh %196 : vector<8x32xf32>
    %cst_78 = arith.constant 1.000000e+00 : f32
    %198 = vector.broadcast %cst_78 : f32 to vector<8x32xf32>
    %199 = arith.addf %197, %198 : vector<8x32xf32>
    %cst_79 = arith.constant 5.000000e-01 : f32
    %200 = vector.broadcast %cst_79 : f32 to vector<8x32xf32>
    %201 = arith.mulf %200, %199 : vector<8x32xf32>
    %202 = vector.extract_strided_slice %185 {offsets = [0, 64], sizes = [8, 32], strides = [1, 1]} : vector<8x128xf32> to vector<8x32xf32>
    %203 = math.tanh %202 : vector<8x32xf32>
    %204 = vector.extract_strided_slice %185 {offsets = [0, 96], sizes = [8, 32], strides = [1, 1]} : vector<8x128xf32> to vector<8x32xf32>
    %cst_80 = arith.constant 5.000000e-01 : f32
    %205 = vector.broadcast %cst_80 : f32 to vector<8x32xf32>
    %206 = arith.mulf %205, %204 : vector<8x32xf32>
    %207 = math.tanh %206 : vector<8x32xf32>
    %cst_81 = arith.constant 1.000000e+00 : f32
    %208 = vector.broadcast %cst_81 : f32 to vector<8x32xf32>
    %209 = arith.addf %207, %208 : vector<8x32xf32>
    %cst_82 = arith.constant 5.000000e-01 : f32
    %210 = vector.broadcast %cst_82 : f32 to vector<8x32xf32>
    %211 = arith.mulf %210, %209 : vector<8x32xf32>
    %212 = arith.mulf %201, %172 : vector<8x32xf32>
    %213 = arith.mulf %193, %203 : vector<8x32xf32>
    %214 = arith.addf %212, %213 : vector<8x32xf32>
    %215 = math.tanh %214 : vector<8x32xf32>
    %216 = arith.mulf %211, %215 : vector<8x32xf32>
    %217 = vector.broadcast %10 : vector<1x32xf32> to vector<8x32xf32>
    %218 = arith.mulf %216, %217 : vector<8x32xf32>
    %cst_83 = arith.constant dense<0.000000e+00> : vector<8xf32>
    %219 = vector.multi_reduction <add>, %218, %cst_83 [1] : vector<8x32xf32> to vector<8xf32>
    %220 = vector.shape_cast %219 : vector<8xf32> to vector<1x8xf32>
    %221 = arith.index_cast %c4_i32 : i32 to index
    %c0_84 = arith.constant 0 : index
    %222 = vector.load %arg9[%221, %c0_84] : memref<8x8xf32, #tpu.memory_space<vmem>>, vector<1x8xf32>
    tpu.vector_store %arg9[%221, %c0_84], %220 {strides = array<i32>} : memref<8x8xf32, #tpu.memory_space<vmem>>, vector<1x8xf32>,
    %c5_i32 = arith.constant 5 : i32
    %c0_85 = arith.constant 0 : index
    %223 = arith.index_cast %c5_i32 : i32 to index
    %c0_86 = arith.constant 0 : index
    %224 = vector.load %arg8[%c0_85, %223, %c0_86] : memref<8x8x128xf32, #tpu.memory_space<vmem>>, vector<8x1x128xf32>
    %225 = vector.shape_cast %224 : vector<8x1x128xf32> to vector<8x128xf32>
    %cst_87 = arith.constant dense<0.000000e+00> : vector<8x128xf32>
    %226 = tpu.matmul %216, %9, %cst_87 {dimension_numbers = #tpu.dot_dimension_numbers<[1], [0], [0], [1], [0, 0, 1, 1], [], []>} : vector<8x32xf32>, vector<32x128xf32>, vector<8x128xf32> -> vector<8x128xf32>
    %227 = arith.addf %225, %226 : vector<8x128xf32>
    %228 = vector.extract_strided_slice %227 {offsets = [0, 0], sizes = [8, 32], strides = [1, 1]} : vector<8x128xf32> to vector<8x32xf32>
    %cst_88 = arith.constant 5.000000e-01 : f32
    %229 = vector.broadcast %cst_88 : f32 to vector<8x32xf32>
    %230 = arith.mulf %229, %228 : vector<8x32xf32>
    %231 = math.tanh %230 : vector<8x32xf32>
    %cst_89 = arith.constant 1.000000e+00 : f32
    %232 = vector.broadcast %cst_89 : f32 to vector<8x32xf32>
    %233 = arith.addf %231, %232 : vector<8x32xf32>
    %cst_90 = arith.constant 5.000000e-01 : f32
    %234 = vector.broadcast %cst_90 : f32 to vector<8x32xf32>
    %235 = arith.mulf %234, %233 : vector<8x32xf32>
    %236 = vector.extract_strided_slice %227 {offsets = [0, 32], sizes = [8, 32], strides = [1, 1]} : vector<8x128xf32> to vector<8x32xf32>
    %cst_91 = arith.constant 5.000000e-01 : f32
    %237 = vector.broadcast %cst_91 : f32 to vector<8x32xf32>
    %238 = arith.mulf %237, %236 : vector<8x32xf32>
    %239 = math.tanh %238 : vector<8x32xf32>
    %cst_92 = arith.constant 1.000000e+00 : f32
    %240 = vector.broadcast %cst_92 : f32 to vector<8x32xf32>
    %241 = arith.addf %239, %240 : vector<8x32xf32>
    %cst_93 = arith.constant 5.000000e-01 : f32
    %242 = vector.broadcast %cst_93 : f32 to vector<8x32xf32>
    %243 = arith.mulf %242, %241 : vector<8x32xf32>
    %244 = vector.extract_strided_slice %227 {offsets = [0, 64], sizes = [8, 32], strides = [1, 1]} : vector<8x128xf32> to vector<8x32xf32>
    %245 = math.tanh %244 : vector<8x32xf32>
    %246 = vector.extract_strided_slice %227 {offsets = [0, 96], sizes = [8, 32], strides = [1, 1]} : vector<8x128xf32> to vector<8x32xf32>
    %cst_94 = arith.constant 5.000000e-01 : f32
    %247 = vector.broadcast %cst_94 : f32 to vector<8x32xf32>
    %248 = arith.mulf %247, %246 : vector<8x32xf32>
    %249 = math.tanh %248 : vector<8x32xf32>
    %cst_95 = arith.constant 1.000000e+00 : f32
    %250 = vector.broadcast %cst_95 : f32 to vector<8x32xf32>
    %251 = arith.addf %249, %250 : vector<8x32xf32>
    %cst_96 = arith.constant 5.000000e-01 : f32
    %252 = vector.broadcast %cst_96 : f32 to vector<8x32xf32>
    %253 = arith.mulf %252, %251 : vector<8x32xf32>
    %254 = arith.mulf %243, %214 : vector<8x32xf32>
    %255 = arith.mulf %235, %245 : vector<8x32xf32>
    %256 = arith.addf %254, %255 : vector<8x32xf32>
    %257 = math.tanh %256 : vector<8x32xf32>
    %258 = arith.mulf %253, %257 : vector<8x32xf32>
    %259 = vector.broadcast %10 : vector<1x32xf32> to vector<8x32xf32>
    %260 = arith.mulf %258, %259 : vector<8x32xf32>
    %cst_97 = arith.constant dense<0.000000e+00> : vector<8xf32>
    %261 = vector.multi_reduction <add>, %260, %cst_97 [1] : vector<8x32xf32> to vector<8xf32>
    %262 = vector.shape_cast %261 : vector<8xf32> to vector<1x8xf32>
    %263 = arith.index_cast %c5_i32 : i32 to index
    %c0_98 = arith.constant 0 : index
    %264 = vector.load %arg9[%263, %c0_98] : memref<8x8xf32, #tpu.memory_space<vmem>>, vector<1x8xf32>
    tpu.vector_store %arg9[%263, %c0_98], %262 {strides = array<i32>} : memref<8x8xf32, #tpu.memory_space<vmem>>, vector<1x8xf32>,
    %c6_i32 = arith.constant 6 : i32
    %c0_99 = arith.constant 0 : index
    %265 = arith.index_cast %c6_i32 : i32 to index
    %c0_100 = arith.constant 0 : index
    %266 = vector.load %arg8[%c0_99, %265, %c0_100] : memref<8x8x128xf32, #tpu.memory_space<vmem>>, vector<8x1x128xf32>
    %267 = vector.shape_cast %266 : vector<8x1x128xf32> to vector<8x128xf32>
    %cst_101 = arith.constant dense<0.000000e+00> : vector<8x128xf32>
    %268 = tpu.matmul %258, %9, %cst_101 {dimension_numbers = #tpu.dot_dimension_numbers<[1], [0], [0], [1], [0, 0, 1, 1], [], []>} : vector<8x32xf32>, vector<32x128xf32>, vector<8x128xf32> -> vector<8x128xf32>
    %269 = arith.addf %267, %268 : vector<8x128xf32>
    %270 = vector.extract_strided_slice %269 {offsets = [0, 0], sizes = [8, 32], strides = [1, 1]} : vector<8x128xf32> to vector<8x32xf32>
    %cst_102 = arith.constant 5.000000e-01 : f32
    %271 = vector.broadcast %cst_102 : f32 to vector<8x32xf32>
    %272 = arith.mulf %271, %270 : vector<8x32xf32>
    %273 = math.tanh %272 : vector<8x32xf32>
    %cst_103 = arith.constant 1.000000e+00 : f32
    %274 = vector.broadcast %cst_103 : f32 to vector<8x32xf32>
    %275 = arith.addf %273, %274 : vector<8x32xf32>
    %cst_104 = arith.constant 5.000000e-01 : f32
    %276 = vector.broadcast %cst_104 : f32 to vector<8x32xf32>
    %277 = arith.mulf %276, %275 : vector<8x32xf32>
    %278 = vector.extract_strided_slice %269 {offsets = [0, 32], sizes = [8, 32], strides = [1, 1]} : vector<8x128xf32> to vector<8x32xf32>
    %cst_105 = arith.constant 5.000000e-01 : f32
    %279 = vector.broadcast %cst_105 : f32 to vector<8x32xf32>
    %280 = arith.mulf %279, %278 : vector<8x32xf32>
    %281 = math.tanh %280 : vector<8x32xf32>
    %cst_106 = arith.constant 1.000000e+00 : f32
    %282 = vector.broadcast %cst_106 : f32 to vector<8x32xf32>
    %283 = arith.addf %281, %282 : vector<8x32xf32>
    %cst_107 = arith.constant 5.000000e-01 : f32
    %284 = vector.broadcast %cst_107 : f32 to vector<8x32xf32>
    %285 = arith.mulf %284, %283 : vector<8x32xf32>
    %286 = vector.extract_strided_slice %269 {offsets = [0, 64], sizes = [8, 32], strides = [1, 1]} : vector<8x128xf32> to vector<8x32xf32>
    %287 = math.tanh %286 : vector<8x32xf32>
    %288 = vector.extract_strided_slice %269 {offsets = [0, 96], sizes = [8, 32], strides = [1, 1]} : vector<8x128xf32> to vector<8x32xf32>
    %cst_108 = arith.constant 5.000000e-01 : f32
    %289 = vector.broadcast %cst_108 : f32 to vector<8x32xf32>
    %290 = arith.mulf %289, %288 : vector<8x32xf32>
    %291 = math.tanh %290 : vector<8x32xf32>
    %cst_109 = arith.constant 1.000000e+00 : f32
    %292 = vector.broadcast %cst_109 : f32 to vector<8x32xf32>
    %293 = arith.addf %291, %292 : vector<8x32xf32>
    %cst_110 = arith.constant 5.000000e-01 : f32
    %294 = vector.broadcast %cst_110 : f32 to vector<8x32xf32>
    %295 = arith.mulf %294, %293 : vector<8x32xf32>
    %296 = arith.mulf %285, %256 : vector<8x32xf32>
    %297 = arith.mulf %277, %287 : vector<8x32xf32>
    %298 = arith.addf %296, %297 : vector<8x32xf32>
    %299 = math.tanh %298 : vector<8x32xf32>
    %300 = arith.mulf %295, %299 : vector<8x32xf32>
    %301 = vector.broadcast %10 : vector<1x32xf32> to vector<8x32xf32>
    %302 = arith.mulf %300, %301 : vector<8x32xf32>
    %cst_111 = arith.constant dense<0.000000e+00> : vector<8xf32>
    %303 = vector.multi_reduction <add>, %302, %cst_111 [1] : vector<8x32xf32> to vector<8xf32>
    %304 = vector.shape_cast %303 : vector<8xf32> to vector<1x8xf32>
    %305 = arith.index_cast %c6_i32 : i32 to index
    %c0_112 = arith.constant 0 : index
    %306 = vector.load %arg9[%305, %c0_112] : memref<8x8xf32, #tpu.memory_space<vmem>>, vector<1x8xf32>
    tpu.vector_store %arg9[%305, %c0_112], %304 {strides = array<i32>} : memref<8x8xf32, #tpu.memory_space<vmem>>, vector<1x8xf32>,
    %c7_i32 = arith.constant 7 : i32
    %c0_113 = arith.constant 0 : index
    %307 = arith.index_cast %c7_i32 : i32 to index
    %c0_114 = arith.constant 0 : index
    %308 = vector.load %arg8[%c0_113, %307, %c0_114] : memref<8x8x128xf32, #tpu.memory_space<vmem>>, vector<8x1x128xf32>
    %309 = vector.shape_cast %308 : vector<8x1x128xf32> to vector<8x128xf32>
    %cst_115 = arith.constant dense<0.000000e+00> : vector<8x128xf32>
    %310 = tpu.matmul %300, %9, %cst_115 {dimension_numbers = #tpu.dot_dimension_numbers<[1], [0], [0], [1], [0, 0, 1, 1], [], []>} : vector<8x32xf32>, vector<32x128xf32>, vector<8x128xf32> -> vector<8x128xf32>
    %311 = arith.addf %309, %310 : vector<8x128xf32>
    %312 = vector.extract_strided_slice %311 {offsets = [0, 0], sizes = [8, 32], strides = [1, 1]} : vector<8x128xf32> to vector<8x32xf32>
    %cst_116 = arith.constant 5.000000e-01 : f32
    %313 = vector.broadcast %cst_116 : f32 to vector<8x32xf32>
    %314 = arith.mulf %313, %312 : vector<8x32xf32>
    %315 = math.tanh %314 : vector<8x32xf32>
    %cst_117 = arith.constant 1.000000e+00 : f32
    %316 = vector.broadcast %cst_117 : f32 to vector<8x32xf32>
    %317 = arith.addf %315, %316 : vector<8x32xf32>
    %cst_118 = arith.constant 5.000000e-01 : f32
    %318 = vector.broadcast %cst_118 : f32 to vector<8x32xf32>
    %319 = arith.mulf %318, %317 : vector<8x32xf32>
    %320 = vector.extract_strided_slice %311 {offsets = [0, 32], sizes = [8, 32], strides = [1, 1]} : vector<8x128xf32> to vector<8x32xf32>
    %cst_119 = arith.constant 5.000000e-01 : f32
    %321 = vector.broadcast %cst_119 : f32 to vector<8x32xf32>
    %322 = arith.mulf %321, %320 : vector<8x32xf32>
    %323 = math.tanh %322 : vector<8x32xf32>
    %cst_120 = arith.constant 1.000000e+00 : f32
    %324 = vector.broadcast %cst_120 : f32 to vector<8x32xf32>
    %325 = arith.addf %323, %324 : vector<8x32xf32>
    %cst_121 = arith.constant 5.000000e-01 : f32
    %326 = vector.broadcast %cst_121 : f32 to vector<8x32xf32>
    %327 = arith.mulf %326, %325 : vector<8x32xf32>
    %328 = vector.extract_strided_slice %311 {offsets = [0, 64], sizes = [8, 32], strides = [1, 1]} : vector<8x128xf32> to vector<8x32xf32>
    %329 = math.tanh %328 : vector<8x32xf32>
    %330 = vector.extract_strided_slice %311 {offsets = [0, 96], sizes = [8, 32], strides = [1, 1]} : vector<8x128xf32> to vector<8x32xf32>
    %cst_122 = arith.constant 5.000000e-01 : f32
    %331 = vector.broadcast %cst_122 : f32 to vector<8x32xf32>
    %332 = arith.mulf %331, %330 : vector<8x32xf32>
    %333 = math.tanh %332 : vector<8x32xf32>
    %cst_123 = arith.constant 1.000000e+00 : f32
    %334 = vector.broadcast %cst_123 : f32 to vector<8x32xf32>
    %335 = arith.addf %333, %334 : vector<8x32xf32>
    %cst_124 = arith.constant 5.000000e-01 : f32
    %336 = vector.broadcast %cst_124 : f32 to vector<8x32xf32>
    %337 = arith.mulf %336, %335 : vector<8x32xf32>
    %338 = arith.mulf %327, %298 : vector<8x32xf32>
    %339 = arith.mulf %319, %329 : vector<8x32xf32>
    %340 = arith.addf %338, %339 : vector<8x32xf32>
    %341 = math.tanh %340 : vector<8x32xf32>
    %342 = arith.mulf %337, %341 : vector<8x32xf32>
    %343 = vector.broadcast %10 : vector<1x32xf32> to vector<8x32xf32>
    %344 = arith.mulf %342, %343 : vector<8x32xf32>
    %cst_125 = arith.constant dense<0.000000e+00> : vector<8xf32>
    %345 = vector.multi_reduction <add>, %344, %cst_125 [1] : vector<8x32xf32> to vector<8xf32>
    %346 = vector.shape_cast %345 : vector<8xf32> to vector<1x8xf32>
    %347 = arith.index_cast %c7_i32 : i32 to index
    %c0_126 = arith.constant 0 : index
    %348 = vector.load %arg9[%347, %c0_126] : memref<8x8xf32, #tpu.memory_space<vmem>>, vector<1x8xf32>
    tpu.vector_store %arg9[%347, %c0_126], %346 {strides = array<i32>} : memref<8x8xf32, #tpu.memory_space<vmem>>, vector<1x8xf32>,
    %c8_i32 = arith.constant 8 : i32
    %c0_127 = arith.constant 0 : index
    %c0_128 = arith.constant 0 : index
    %349 = vector.load %arg9[%c0_127, %c0_128] : memref<8x8xf32, #tpu.memory_space<vmem>>, vector<8x8xf32>
    %350 = tpu.transpose %349, [1, 0] : vector<8x8xf32> -> vector<8x8xf32>
    %c0_129 = arith.constant 0 : index
    %c0_130 = arith.constant 0 : index
    %351 = vector.load %arg6[%c0_129, %c0_130] : memref<1x1xf32, #tpu.memory_space<vmem>>, vector<1x1xf32>
    %352 = vector.broadcast %351 : vector<1x1xf32> to vector<8x8xf32>
    %353 = arith.addf %350, %352 : vector<8x8xf32>
    %c0_131 = arith.constant 0 : index
    %c0_132 = arith.constant 0 : index
    %354 = vector.load %arg7[%c0_131, %c0_132] : memref<8x8xf32, #tpu.memory_space<vmem>>, vector<8x8xf32>
    tpu.vector_store %arg7[%c0_131, %c0_132], %353 {strides = array<i32>} : memref<8x8xf32, #tpu.memory_space<vmem>>, vector<8x8xf32>,
    return
  }
  func.func @transform_0(%arg0: i32) -> (i32, i32, i32) {
    %c0_i32 = arith.constant 0 : i32
    %c0_i32_0 = arith.constant 0 : i32
    %c0_i32_1 = arith.constant 0 : i32
    return %arg0, %c0_i32, %c0_i32_0 : i32, i32, i32
  }
  func.func @transform_1(%arg0: i32) -> (i32, i32) {
    %c0_i32 = arith.constant 0 : i32
    %c0_i32_0 = arith.constant 0 : i32
    %c0_i32_1 = arith.constant 0 : i32
    return %c0_i32, %c0_i32_0 : i32, i32
  }
  func.func @transform_2(%arg0: i32) -> (i32, i32) {
    %c0_i32 = arith.constant 0 : i32
    %c0_i32_0 = arith.constant 0 : i32
    %c0_i32_1 = arith.constant 0 : i32
    return %c0_i32, %c0_i32_0 : i32, i32
  }
  func.func @transform_3(%arg0: i32) -> (i32, i32) {
    %c0_i32 = arith.constant 0 : i32
    %c0_i32_0 = arith.constant 0 : i32
    %c0_i32_1 = arith.constant 0 : i32
    return %c0_i32, %c0_i32_0 : i32, i32
  }
  func.func @transform_4(%arg0: i32) -> (i32, i32) {
    %c0_i32 = arith.constant 0 : i32
    %c0_i32_0 = arith.constant 0 : i32
    %c0_i32_1 = arith.constant 0 : i32
    return %c0_i32, %c0_i32_0 : i32, i32
  }
  func.func @transform_5(%arg0: i32) -> (i32, i32) {
    %c0_i32 = arith.constant 0 : i32
    %c0_i32_0 = arith.constant 0 : i32
    %c0_i32_1 = arith.constant 0 : i32
    return %c0_i32, %c0_i32_0 : i32, i32
  }
  func.func @transform_6(%arg0: i32) -> (i32, i32) {
    %c0_i32 = arith.constant 0 : i32
    %c0_i32_0 = arith.constant 0 : i32
    return %arg0, %c0_i32 : i32, i32
  }
}

</mosaic_0001>

<llo_original>
// kernel: tpu_custom_call.1
$region0: #{tpu_custom_call.1}
  #allocation0 [shape = 'u32[]', space=smem, size = 0x4, offset = 0x4, fixed_abs, tag = 'smem constant byte address 0x4 - core index']
  #allocation1 [shape = 'u32[72,128]{1,0:T(1,128)}', space=vmem, size = 0x9000, scoped, tag = 'internal scratch']
  #allocation2 [shape = 'f32[8,8,128]{2,1,0:T(8,128)}', space=vmem, size = 0x8000, scoped, tag = 'scratch operand']
  #allocation3 [shape = 'f32[8,8]{1,0:T(8,128)}', space=vmem, size = 0x1000, scoped, tag = 'scratch operand']
  #allocation4 [shape = 'f32[1,1]{1,0:T(1,128)S(1)}', space=vmem, size = 0x200, scoped, tag = 'scoped memory for tpu_custom_call.1']
  %s0 = inlined_call_operand.hbm [shape: f32[8,8,32], index: 0, kind: input, shape index: {}]
  %s1 = inlined_call_operand.hbm [shape: f32[32,128], index: 1, kind: input, shape index: {}]
  %s2 = inlined_call_operand.hbm [shape: f32[32,128], index: 2, kind: input, shape index: {}]
  %s3 = inlined_call_operand.vmem [shape: f32[1,128], index: 3, kind: input, shape index: {}]
  %s4 = inlined_call_operand.vmem [shape: f32[1,32], index: 4, kind: input, shape index: {}]
  %s5 = inlined_call_operand.<no memory space> [shape: f32[1,1], index: 5, kind: input, shape index: {}]
  %s6 = inlined_call_operand.hbm [shape: f32[8,8], index: 6, kind: output, shape index: {}]
  %s7 = sld [smem:[#allocation0]]
  $region46: #{tpu_custom_call.1} parent=0
    _
  %s9 = ssub.s32 1, %s7
  %s10 = scalar_select 0, %s9, %s7
  %v11 = vstv %s5
  %12 = vst [vmem:[#allocation4] sm:$0x1] %v11
  $region1: #{tpu_custom_call.1} parent=0
    #allocation5 [shape = 'u8[32768]{0}', space=vmem, size = 0x8000, scoped, tag = 'input window, operand 0, single buffered']
    #allocation6 [shape = 's32[1]{0}', space=sflag, size = 0x4, scoped, tag = 'scoped memory for tpu_custom_call.1']
    #allocation7 [shape = 's32[1]{0}', space=sflag, size = 0x4, scoped, tag = 'scoped memory for tpu_custom_call.1']
    #allocation8 [shape = 'u8[16384]{0}', space=vmem, size = 0x4000, scoped, tag = 'input window, operand 1, single buffered']
    #allocation9 [shape = 's32[1]{0}', space=sflag, size = 0x4, scoped, tag = 'scoped memory for tpu_custom_call.1']
    #allocation10 [shape = 'u8[16384]{0}', space=vmem, size = 0x4000, scoped, tag = 'input window, operand 2, single buffered']
    #allocation11 [shape = 'u8[4096]{0}', space=vmem, size = 0x1000, scoped, tag = 'output window, operand 0, single buffered']
    %13 = vsyncpa [#allocation6], 0
    %14 = vsyncpa [#allocation9], 0
    %15 = vsyncpa [#allocation7], 0
    // Predicated region
    $region2: #{tpu_custom_call.1} parent=1 // pred_check
      _
    $region3: #{tpu_custom_call.1} parent=1 // pred_check_branch
      %17 = sbr.rel (0) target = $region5
    $region4: #{tpu_custom_call.1} parent=1 // pred_region
      %19 = vsyncadd [#allocation6], 0
      %s20 = sshll.u32 %s0, 4
      %s21 = int_to_ptr.hbm [resolvable:$true] %s20
      %s22 = sshll.u32 [#allocation5], 4
      %s23 = int_to_ptr.vmem [resolvable:$true] %s22
      %28 = dma.hbm_to_vmem [thread:$0]  %s21, 1024, %s23, [#allocation6], 128, 128, 8
    $region5: #{tpu_custom_call.1} parent=1 // pred_fallthru
      _
    // Predicated region
    $region6: #{tpu_custom_call.1} parent=1 // pred_check
      _
    $region7: #{tpu_custom_call.1} parent=1 // pred_check_branch
      %30 = sbr.rel (0) target = $region9
    $region8: #{tpu_custom_call.1} parent=1 // pred_region
      %32 = vsyncadd [#allocation9], 0
      %s33 = sshll.u32 %s1, 4
      %s34 = int_to_ptr.hbm [resolvable:$true] %s33
      %s35 = sshll.u32 [#allocation8], 4
      %s36 = int_to_ptr.vmem [resolvable:$true] %s35
      %41 = dma.hbm_to_vmem [thread:$0]  %s34, 512, %s36, [#allocation9], 128, 128, 8
    $region9: #{tpu_custom_call.1} parent=1 // pred_fallthru
      _
    // Predicated region
    $region10: #{tpu_custom_call.1} parent=1 // pred_check
      _
    $region11: #{tpu_custom_call.1} parent=1 // pred_check_branch
      %43 = sbr.rel (0) target = $region13
    $region12: #{tpu_custom_call.1} parent=1 // pred_region
      %45 = vsyncadd [#allocation9], 0
      %s46 = sshll.u32 %s2, 4
      %s47 = int_to_ptr.hbm [resolvable:$true] %s46
      %s48 = sshll.u32 [#allocation10], 4
      %s49 = int_to_ptr.vmem [resolvable:$true] %s48
      %54 = dma.hbm_to_vmem [thread:$0]  %s47, 512, %s49, [#allocation9], 128, 128, 8
    $region13: #{tpu_custom_call.1} parent=1 // pred_fallthru
      _
    // Predicated region
    $region14: #{tpu_custom_call.1} parent=1 // pred_check
      _
    $region15: #{tpu_custom_call.1} parent=1 // pred_check_branch
      %56 = sbr.rel (0) target = $region17
    $region16: #{tpu_custom_call.1} parent=1 // pred_region
      _
    $region17: #{tpu_custom_call.1} parent=1 // pred_fallthru
      _
    // Predicated region
    $region18: #{tpu_custom_call.1} parent=1 // pred_check
      _
    $region19: #{tpu_custom_call.1} parent=1 // pred_check_branch
      %58 = sbr.rel (0) target = $region21
    $region20: #{tpu_custom_call.1} parent=1 // pred_region
      _
    $region21: #{tpu_custom_call.1} parent=1 // pred_fallthru
      _
    // Predicated region
    $region22: #{tpu_custom_call.1} parent=1 // pred_check
      _
    $region23: #{tpu_custom_call.1} parent=1 // pred_check_branch
      %60 = sbr.rel (0) target = $region25
    $region24: #{tpu_custom_call.1} parent=1 // pred_region
      _
    $region25: #{tpu_custom_call.1} parent=1 // pred_fallthru
      _
    // Predicated region
    $region26: #{tpu_custom_call.1} parent=1 // pred_check
      _
    $region27: #{tpu_custom_call.1} parent=1 // pred_check_branch
      %62 = sbr.rel (0) target = $region29
    $region28: #{tpu_custom_call.1} parent=1 // pred_region
      %64 = dma.done [#allocation6], 1024
    $region29: #{tpu_custom_call.1} parent=1 // pred_fallthru
      _
    // Predicated region
    $region30: #{tpu_custom_call.1} parent=1 // pred_check
      _
    $region31: #{tpu_custom_call.1} parent=1 // pred_check_branch
      %66 = sbr.rel (0) target = $region33
    $region32: #{tpu_custom_call.1} parent=1 // pred_region
      %68 = dma.done [#allocation9], 512
    $region33: #{tpu_custom_call.1} parent=1 // pred_fallthru
      _
    // Predicated region
    $region34: #{tpu_custom_call.1} parent=1 // pred_check
      _
    $region35: #{tpu_custom_call.1} parent=1 // pred_check_branch
      %70 = sbr.rel (0) target = $region37
    $region36: #{tpu_custom_call.1} parent=1 // pred_region
      %72 = dma.done [#allocation9], 512
    $region37: #{tpu_custom_call.1} parent=1 // pred_fallthru
      _
    %v73 = vld [vmem:[#allocation5] sm:$0xff]
    %v74 = vld [vmem:[#allocation5 + $0x8] sm:$0xff]
    %v75 = vld [vmem:[#allocation5 + $0x10] sm:$0xff]
    %v76 = vld [vmem:[#allocation5 + $0x18] sm:$0xff]
    %v77 = vld [vmem:[#allocation5 + $0x20] sm:$0xff]
    %v78 = vld [vmem:[#allocation5 + $0x28] sm:$0xff]
    %v79 = vld [vmem:[#allocation5 + $0x30] sm:$0xff]
    %v80 = vld [vmem:[#allocation5 + $0x38] sm:$0xff]
    %v81 = vld [vmem:[#allocation8] sm:$0xff]
    %v82 = vld [vmem:[#allocation8 + $0x8] sm:$0xff]
    %v83 = vld [vmem:[#allocation8 + $0x10] sm:$0xff]
    %v84 = vld [vmem:[#allocation8 + $0x18] sm:$0xff]
    %v85 = vld [vmem:[%s3] sm:$0x1]
    %v87 = vperm.slane %v85, 0
    %vm89 = vcmask 261120
    %v91 = vsel %vm89, %v73, 0
    %v94 = vsel %vm89, %v74, 0
    %v97 = vsel %vm89, %v75, 0
    %v100 = vsel %vm89, %v76, 0
    %v103 = vsel %vm89, %v77, 0
    %v106 = vsel %vm89, %v78, 0
    %v109 = vsel %vm89, %v79, 0
    %v112 = vsel %vm89, %v80, 0
    %114 = vmatpush.msra.mxu0 0.0
    %115 = vmatpush.msra.mxu0 0.0
    %116 = vmatpush.msra.mxu0 0.0
    %117 = vmatpush.msra.mxu0 0.0
    %118 = vmatpush.msra.mxu0 0.0
    %119 = vmatpush.msra.mxu0 0.0
    %120 = vmatpush.msra.mxu0 0.0
    %121 = vmatpush.msra.mxu0 0.0
    %122 = vmatpush.msra.mxu0 0.0
    %123 = vmatpush.msra.mxu0 0.0
    %124 = vmatpush.msra.mxu0 0.0
    %125 = vmatpush.msra.mxu0 0.0
    %126 = vmatpush.msra.mxu0 %v84
    %127 = vmatpush.msra.mxu0 %v83
    %128 = vmatpush.msra.mxu0 %v82
    %129 = vmatpush.msra.mxu0 %v81
    %130 = vmatmul.f32.gmra.mxu0 %v91
    %v131 = vpop.f32.mrf.mxu0
    %v132 = vadd.f32 %v87, %v131
    %133 = vmatmul.f32.gmra.mxu0 %v94
    %v134 = vpop.f32.mrf.mxu0
    %v135 = vadd.f32 %v87, %v134
    %136 = vmatmul.f32.gmra.mxu0 %v97
    %v137 = vpop.f32.mrf.mxu0
    %v138 = vadd.f32 %v87, %v137
    %139 = vmatmul.f32.gmra.mxu0 %v100
    %v140 = vpop.f32.mrf.mxu0
    %v141 = vadd.f32 %v87, %v140
    %142 = vmatmul.f32.gmra.mxu0 %v103
    %v143 = vpop.f32.mrf.mxu0
    %v144 = vadd.f32 %v87, %v143
    %145 = vmatmul.f32.gmra.mxu0 %v106
    %v146 = vpop.f32.mrf.mxu0
    %v147 = vadd.f32 %v87, %v146
    %148 = vmatmul.f32.gmra.mxu0 %v109
    %v149 = vpop.f32.mrf.mxu0
    %v150 = vadd.f32 %v87, %v149
    %151 = vmatmul.f32.gmra.mxu0 %v112
    %v152 = vpop.f32.mrf.mxu0
    %v153 = vadd.f32 %v87, %v152
    %154 = vdwg.mxu0
    %155 = vst [vmem:[#allocation2] sm:$0xff] %v132
    %156 = vst [vmem:[#allocation2 + $0x8] sm:$0xff] %v135
    %157 = vst [vmem:[#allocation2 + $0x10] sm:$0xff] %v138
    %158 = vst [vmem:[#allocation2 + $0x18] sm:$0xff] %v141
    %159 = vst [vmem:[#allocation2 + $0x20] sm:$0xff] %v144
    %160 = vst [vmem:[#allocation2 + $0x28] sm:$0xff] %v147
    %161 = vst [vmem:[#allocation2 + $0x30] sm:$0xff] %v150
    %162 = vst [vmem:[#allocation2 + $0x38] sm:$0xff] %v153
    %v163 = vld [vmem:[#allocation10] sm:$0xff]
    %v164 = vld [vmem:[#allocation10 + $0x8] sm:$0xff]
    %v165 = vld [vmem:[#allocation10 + $0x10] sm:$0xff]
    %v166 = vld [vmem:[#allocation10 + $0x18] sm:$0xff]
    %v167 = vld [vmem:[%s4] sm:$0x1]
    %v168 = vld [vmem:[#allocation2] sm:$0x1]
    %v169 = vld [vmem:[#allocation2 + $0x8] sm:$0x1]
    %v170 = vld [vmem:[#allocation2 + $0x10] sm:$0x1]
    %v171 = vld [vmem:[#allocation2 + $0x18] sm:$0x1]
    %v172 = vld [vmem:[#allocation2 + $0x20] sm:$0x1]
    %v173 = vld [vmem:[#allocation2 + $0x28] sm:$0x1]
    %v174 = vld [vmem:[#allocation2 + $0x30] sm:$0x1]
    %v175 = vld [vmem:[#allocation2 + $0x38] sm:$0x1]
    %v177 = vsel %vm89, 0.0, 0
    %179 = vmatpush.msra.mxu0 0.0
    %180 = vmatpush.msra.mxu0 0.0
    %181 = vmatpush.msra.mxu0 0.0
    %182 = vmatpush.msra.mxu0 0.0
    %183 = vmatpush.msra.mxu0 0.0
    %184 = vmatpush.msra.mxu0 0.0
    %185 = vmatpush.msra.mxu0 0.0
    %186 = vmatpush.msra.mxu0 0.0
    %187 = vmatpush.msra.mxu0 0.0
    %188 = vmatpush.msra.mxu0 0.0
    %189 = vmatpush.msra.mxu0 0.0
    %190 = vmatpush.msra.mxu0 0.0
    %191 = vmatpush.msra.mxu0 %v166
    %192 = vmatpush.msra.mxu0 %v165
    %193 = vmatpush.msra.mxu0 %v164
    %194 = vmatpush.msra.mxu0 %v163
    %195 = vmatmul.f32.gmra.mxu0 %v177
    %v196 = vpop.f32.mrf.mxu0
    %v197 = vadd.f32 0.0, %v196
    %198 = vdwg.mxu0
    %v200 = vrot.slane %v197, 1
    %v201 = vrot.slane %v197, 2
    %v202 = vrot.slane %v197, 3
    %v203 = vrot.slane %v197, 4
    %v204 = vrot.slane %v197, 5
    %v205 = vrot.slane %v197, 6
    %v206 = vrot.slane %v197, 7
    %v215 = vadd.f32 %v168, %v197
    %v216 = vadd.f32 %v169, %v200
    %v217 = vadd.f32 %v170, %v201
    %v218 = vadd.f32 %v171, %v202
    %v219 = vadd.f32 %v172, %v203
    %v220 = vadd.f32 %v173, %v204
    %v221 = vadd.f32 %v174, %v205
    %v222 = vadd.f32 %v175, %v206
    %v223 = vmul.f32 %v215, 0.5
    %v224 = vmul.f32 %v216, 0.5
    %v225 = vmul.f32 %v217, 0.5
    %v226 = vmul.f32 %v218, 0.5
    %v227 = vmul.f32 %v219, 0.5
    %v228 = vmul.f32 %v220, 0.5
    %v229 = vmul.f32 %v221, 0.5
    %v230 = vmul.f32 %v222, 0.5
    %v231 = vtanh.pop %v223
    %v232 = vtanh.pop %v224
    %v233 = vtanh.pop %v225
    %v234 = vtanh.pop %v226
    %v235 = vtanh.pop %v227
    %v236 = vtanh.pop %v228
    %v237 = vtanh.pop %v229
    %v238 = vtanh.pop %v230
    %v239 = vadd.f32 %v231, 1.0
    %v240 = vadd.f32 %v232, 1.0
    %v241 = vadd.f32 %v233, 1.0
    %v242 = vadd.f32 %v234, 1.0
    %v243 = vadd.f32 %v235, 1.0
    %v244 = vadd.f32 %v236, 1.0
    %v245 = vadd.f32 %v237, 1.0
    %v246 = vadd.f32 %v238, 1.0
    %v247 = vmul.f32 %v239, 0.5
    %v248 = vmul.f32 %v240, 0.5
    %v249 = vmul.f32 %v241, 0.5
    %v250 = vmul.f32 %v242, 0.5
    %v251 = vmul.f32 %v243, 0.5
    %v252 = vmul.f32 %v244, 0.5
    %v253 = vmul.f32 %v245, 0.5
    %v254 = vmul.f32 %v246, 0.5
    %v255 = vtanh.pop %v215
    %v256 = vtanh.pop %v216
    %v257 = vtanh.pop %v217
    %v258 = vtanh.pop %v218
    %v259 = vtanh.pop %v219
    %v260 = vtanh.pop %v220
    %v261 = vtanh.pop %v221
    %v262 = vtanh.pop %v222
    %v263 = vmul.f32 %v247, 0.0
    %v264 = vmul.f32 %v248, 0.0
    %v265 = vmul.f32 %v249, 0.0
    %v266 = vmul.f32 %v250, 0.0
    %v267 = vmul.f32 %v251, 0.0
    %v268 = vmul.f32 %v252, 0.0
    %v269 = vmul.f32 %v253, 0.0
    %v270 = vmul.f32 %v254, 0.0
    %279 = vrot.lane.b32.xlu0 %v255, 64
    %v280 = vpop.permute.xlu0 %279
    %281 = vrot.lane.b32.xlu0 %v256, 64
    %v282 = vpop.permute.xlu0 %281
    %283 = vrot.lane.b32.xlu0 %v257, 64
    %v284 = vpop.permute.xlu0 %283
    %285 = vrot.lane.b32.xlu0 %v258, 64
    %v286 = vpop.permute.xlu0 %285
    %287 = vrot.lane.b32.xlu0 %v259, 64
    %v288 = vpop.permute.xlu0 %287
    %289 = vrot.lane.b32.xlu0 %v260, 64
    %v290 = vpop.permute.xlu0 %289
    %291 = vrot.lane.b32.xlu0 %v261, 64
    %v292 = vpop.permute.xlu0 %291
    %293 = vrot.lane.b32.xlu0 %v262, 64
    %v294 = vpop.permute.xlu0 %293
    %v303 = vmul.f32 %v247, %v280
    %v304 = vmul.f32 %v248, %v282
    %v305 = vmul.f32 %v249, %v284
    %v306 = vmul.f32 %v250, %v286
    %v307 = vmul.f32 %v251, %v288
    %v308 = vmul.f32 %v252, %v290
    %v309 = vmul.f32 %v253, %v292
    %v310 = vmul.f32 %v254, %v294
    %319 = vrot.lane.b32.xlu0 %v303, 32
    %v320 = vpop.permute.xlu0 %319
    %321 = vrot.lane.b32.xlu0 %v304, 32
    %v322 = vpop.permute.xlu0 %321
    %323 = vrot.lane.b32.xlu0 %v305, 32
    %v324 = vpop.permute.xlu0 %323
    %325 = vrot.lane.b32.xlu0 %v306, 32
    %v326 = vpop.permute.xlu0 %325
    %327 = vrot.lane.b32.xlu0 %v307, 32
    %v328 = vpop.permute.xlu0 %327
    %329 = vrot.lane.b32.xlu0 %v308, 32
    %v330 = vpop.permute.xlu0 %329
    %331 = vrot.lane.b32.xlu0 %v309, 32
    %v332 = vpop.permute.xlu0 %331
    %333 = vrot.lane.b32.xlu0 %v310, 32
    %v334 = vpop.permute.xlu0 %333
    %v343 = vadd.f32 %v263, %v320
    %v344 = vadd.f32 %v264, %v322
    %v345 = vadd.f32 %v265, %v324
    %v346 = vadd.f32 %v266, %v326
    %v347 = vadd.f32 %v267, %v328
    %v348 = vadd.f32 %v268, %v330
    %v349 = vadd.f32 %v269, %v332
    %v350 = vadd.f32 %v270, %v334
    %v351 = vtanh.pop %v343
    %v352 = vtanh.pop %v344
    %v353 = vtanh.pop %v345
    %v354 = vtanh.pop %v346
    %v355 = vtanh.pop %v347
    %v356 = vtanh.pop %v348
    %v357 = vtanh.pop %v349
    %v358 = vtanh.pop %v350
    %367 = vrot.lane.b32.xlu0 %v351, 64
    %v368 = vpop.permute.xlu0 %367
    %369 = vrot.lane.b32.xlu0 %v352, 64
    %v370 = vpop.permute.xlu0 %369
    %371 = vrot.lane.b32.xlu0 %v353, 64
    %v372 = vpop.permute.xlu0 %371
    %373 = vrot.lane.b32.xlu0 %v354, 64
    %v374 = vpop.permute.xlu0 %373
    %375 = vrot.lane.b32.xlu0 %v355, 64
    %v376 = vpop.permute.xlu0 %375
    %377 = vrot.lane.b32.xlu0 %v356, 64
    %v378 = vpop.permute.xlu0 %377
    %379 = vrot.lane.b32.xlu0 %v357, 64
    %v380 = vpop.permute.xlu0 %379
    %381 = vrot.lane.b32.xlu0 %v358, 64
    %v382 = vpop.permute.xlu0 %381
    %v391 = vmul.f32 %v247, %v368
    %v392 = vmul.f32 %v248, %v370
    %v393 = vmul.f32 %v249, %v372
    %v394 = vmul.f32 %v250, %v374
    %v395 = vmul.f32 %v251, %v376
    %v396 = vmul.f32 %v252, %v378
    %v397 = vmul.f32 %v253, %v380
    %v398 = vmul.f32 %v254, %v382
    %v400 = vperm.slane %v167, 0
    %401 = vrot.lane.b32.xlu0 %v400, 96
    %v402 = vpop.permute.xlu0 %401
    %v404 = vmul.f32 %v391, %v402
    %v405 = vmul.f32 %v392, %v402
    %v406 = vmul.f32 %v393, %v402
    %v407 = vmul.f32 %v394, %v402
    %v408 = vmul.f32 %v395, %v402
    %v409 = vmul.f32 %v396, %v402
    %v410 = vmul.f32 %v397, %v402
    %v411 = vmul.f32 %v398, %v402
    %v420 = vrot.slane %v405, 7
    %vm421 = vcmask 1041409
    %v422 = vsel %vm421, %v420, %v404
    %v423 = vrot.slane %v406, 6
    %vm424 = vcmask 1042434
    %v425 = vsel %vm424, %v423, %v422
    %v426 = vrot.slane %v407, 5
    %vm427 = vcmask 1043459
    %v428 = vsel %vm427, %v426, %v425
    %v429 = vrot.slane %v408, 4
    %vm430 = vcmask 1044484
    %v431 = vsel %vm430, %v429, %v428
    %v432 = vrot.slane %v409, 3
    %vm433 = vcmask 1045509
    %v434 = vsel %vm433, %v432, %v431
    %v435 = vrot.slane %v410, 2
    %vm436 = vcmask 1046534
    %v437 = vsel %vm436, %v435, %v434
    %v438 = vrot.slane %v411, 1
    %vm439 = vcmask 1047559
    %v440 = vsel %vm439, %v438, %v437
    %441 = vrot.lane.b32.xlu0 %v440, 32
    %v442 = vpop.permute.xlu0 %441
    %v444 = vsel %vm89, %v442, 0.0
    %445 = vadd.xlane.f32.xlu0 %v444
    %v446 = vpop.xlane.xlu0 %445
    %v448 = vlaneseq
    %v449 = vand.u32 %v448, 127
    %v450 = vperm.slane %v446, %v449
    %vm452 = vcmask 57344
    %453 = vst.msk [vmem:[#allocation3] sm:$0x1] %vm452, %v450
    %v454 = vld [vmem:[#allocation2 + $0x1] sm:$0x1]
    %v455 = vld [vmem:[#allocation2 + $0x9] sm:$0x1]
    %v456 = vld [vmem:[#allocation2 + $0x11] sm:$0x1]
    %v457 = vld [vmem:[#allocation2 + $0x19] sm:$0x1]
    %v458 = vld [vmem:[#allocation2 + $0x21] sm:$0x1]
    %v459 = vld [vmem:[#allocation2 + $0x29] sm:$0x1]
    %v460 = vld [vmem:[#allocation2 + $0x31] sm:$0x1]
    %v461 = vld [vmem:[#allocation2 + $0x39] sm:$0x1]
    %v470 = vrot.slane %v392, 7
    %v471 = vsel %vm421, %v470, %v391
    %v472 = vrot.slane %v393, 6
    %v473 = vsel %vm424, %v472, %v471
    %v474 = vrot.slane %v394, 5
    %v475 = vsel %vm427, %v474, %v473
    %v476 = vrot.slane %v395, 4
    %v477 = vsel %vm430, %v476, %v475
    %v478 = vrot.slane %v396, 3
    %v479 = vsel %vm433, %v478, %v477
    %v480 = vrot.slane %v397, 2
    %v481 = vsel %vm436, %v480, %v479
    %v482 = vrot.slane %v398, 1
    %v483 = vsel %vm439, %v482, %v481
    %484 = vrot.lane.b32.xlu0 %v483, 32
    %v485 = vpop.permute.xlu0 %484
    %v486 = vsel %vm89, %v485, 0
    %488 = vmatpush.msra.mxu0 0.0
    %489 = vmatpush.msra.mxu0 0.0
    %490 = vmatpush.msra.mxu0 0.0
    %491 = vmatpush.msra.mxu0 0.0
    %492 = vmatpush.msra.mxu0 0.0
    %493 = vmatpush.msra.mxu0 0.0
    %494 = vmatpush.msra.mxu0 0.0
    %495 = vmatpush.msra.mxu0 0.0
    %496 = vmatpush.msra.mxu0 0.0
    %497 = vmatpush.msra.mxu0 0.0
    %498 = vmatpush.msra.mxu0 0.0
    %499 = vmatpush.msra.mxu0 0.0
    %500 = vmatpush.msra.mxu0 %v166
    %501 = vmatpush.msra.mxu0 %v165
    %502 = vmatpush.msra.mxu0 %v164
    %503 = vmatpush.msra.mxu0 %v163
    %504 = vmatmul.f32.gmra.mxu0 %v486
    %v505 = vpop.f32.mrf.mxu0
    %v506 = vadd.f32 0.0, %v505
    %507 = vdwg.mxu0
    %v509 = vrot.slane %v506, 1
    %v510 = vrot.slane %v506, 2
    %v511 = vrot.slane %v506, 3
    %v512 = vrot.slane %v506, 4
    %v513 = vrot.slane %v506, 5
    %v514 = vrot.slane %v506, 6
    %v515 = vrot.slane %v506, 7
    %v524 = vadd.f32 %v454, %v506
    %v525 = vadd.f32 %v455, %v509
    %v526 = vadd.f32 %v456, %v510
    %v527 = vadd.f32 %v457, %v511
    %v528 = vadd.f32 %v458, %v512
    %v529 = vadd.f32 %v459, %v513
    %v530 = vadd.f32 %v460, %v514
    %v531 = vadd.f32 %v461, %v515
    %v532 = vmul.f32 %v524, 0.5
    %v533 = vmul.f32 %v525, 0.5
    %v534 = vmul.f32 %v526, 0.5
    %v535 = vmul.f32 %v527, 0.5
    %v536 = vmul.f32 %v528, 0.5
    %v537 = vmul.f32 %v529, 0.5
    %v538 = vmul.f32 %v530, 0.5
    %v539 = vmul.f32 %v531, 0.5
    %v540 = vtanh.pop %v532
    %v541 = vtanh.pop %v533
    %v542 = vtanh.pop %v534
    %v543 = vtanh.pop %v535
    %v544 = vtanh.pop %v536
    %v545 = vtanh.pop %v537
    %v546 = vtanh.pop %v538
    %v547 = vtanh.pop %v539
    %v548 = vadd.f32 %v540, 1.0
    %v549 = vadd.f32 %v541, 1.0
    %v550 = vadd.f32 %v542, 1.0
    %v551 = vadd.f32 %v543, 1.0
    %v552 = vadd.f32 %v544, 1.0
    %v553 = vadd.f32 %v545, 1.0
    %v554 = vadd.f32 %v546, 1.0
    %v555 = vadd.f32 %v547, 1.0
    %v556 = vmul.f32 %v548, 0.5
    %v557 = vmul.f32 %v549, 0.5
    %v558 = vmul.f32 %v550, 0.5
    %v559 = vmul.f32 %v551, 0.5
    %v560 = vmul.f32 %v552, 0.5
    %v561 = vmul.f32 %v553, 0.5
    %v562 = vmul.f32 %v554, 0.5
    %v563 = vmul.f32 %v555, 0.5
    %v564 = vtanh.pop %v524
    %v565 = vtanh.pop %v525
    %v566 = vtanh.pop %v526
    %v567 = vtanh.pop %v527
    %v568 = vtanh.pop %v528
    %v569 = vtanh.pop %v529
    %v570 = vtanh.pop %v530
    %v571 = vtanh.pop %v531
    %v572 = vmul.f32 %v556, %v343
    %v573 = vmul.f32 %v557, %v344
    %v574 = vmul.f32 %v558, %v345
    %v575 = vmul.f32 %v559, %v346
    %v576 = vmul.f32 %v560, %v347
    %v577 = vmul.f32 %v561, %v348
    %v578 = vmul.f32 %v562, %v349
    %v579 = vmul.f32 %v563, %v350
    %588 = vrot.lane.b32.xlu0 %v564, 64
    %v589 = vpop.permute.xlu0 %588
    %590 = vrot.lane.b32.xlu0 %v565, 64
    %v591 = vpop.permute.xlu0 %590
    %592 = vrot.lane.b32.xlu0 %v566, 64
    %v593 = vpop.permute.xlu0 %592
    %594 = vrot.lane.b32.xlu0 %v567, 64
    %v595 = vpop.permute.xlu0 %594
    %596 = vrot.lane.b32.xlu0 %v568, 64
    %v597 = vpop.permute.xlu0 %596
    %598 = vrot.lane.b32.xlu0 %v569, 64
    %v599 = vpop.permute.xlu0 %598
    %600 = vrot.lane.b32.xlu0 %v570, 64
    %v601 = vpop.permute.xlu0 %600
    %602 = vrot.lane.b32.xlu0 %v571, 64
    %v603 = vpop.permute.xlu0 %602
    %v612 = vmul.f32 %v556, %v589
    %v613 = vmul.f32 %v557, %v591
    %v614 = vmul.f32 %v558, %v593
    %v615 = vmul.f32 %v559, %v595
    %v616 = vmul.f32 %v560, %v597
    %v617 = vmul.f32 %v561, %v599
    %v618 = vmul.f32 %v562, %v601
    %v619 = vmul.f32 %v563, %v603
    %628 = vrot.lane.b32.xlu0 %v612, 32
    %v629 = vpop.permute.xlu0 %628
    %630 = vrot.lane.b32.xlu0 %v613, 32
    %v631 = vpop.permute.xlu0 %630
    %632 = vrot.lane.b32.xlu0 %v614, 32
    %v633 = vpop.permute.xlu0 %632
    %634 = vrot.lane.b32.xlu0 %v615, 32
    %v635 = vpop.permute.xlu0 %634
    %636 = vrot.lane.b32.xlu0 %v616, 32
    %v637 = vpop.permute.xlu0 %636
    %638 = vrot.lane.b32.xlu0 %v617, 32
    %v639 = vpop.permute.xlu0 %638
    %640 = vrot.lane.b32.xlu0 %v618, 32
    %v641 = vpop.permute.xlu0 %640
    %642 = vrot.lane.b32.xlu0 %v619, 32
    %v643 = vpop.permute.xlu0 %642
    %v652 = vadd.f32 %v572, %v629
    %v653 = vadd.f32 %v573, %v631
    %v654 = vadd.f32 %v574, %v633
    %v655 = vadd.f32 %v575, %v635
    %v656 = vadd.f32 %v576, %v637
    %v657 = vadd.f32 %v577, %v639
    %v658 = vadd.f32 %v578, %v641
    %v659 = vadd.f32 %v579, %v643
    %v660 = vtanh.pop %v652
    %v661 = vtanh.pop %v653
    %v662 = vtanh.pop %v654
    %v663 = vtanh.pop %v655
    %v664 = vtanh.pop %v656
    %v665 = vtanh.pop %v657
    %v666 = vtanh.pop %v658
    %v667 = vtanh.pop %v659
    %676 = vrot.lane.b32.xlu0 %v660, 64
    %v677 = vpop.permute.xlu0 %676
    %678 = vrot.lane.b32.xlu0 %v661, 64
    %v679 = vpop.permute.xlu0 %678
    %680 = vrot.lane.b32.xlu0 %v662, 64
    %v681 = vpop.permute.xlu0 %680
    %682 = vrot.lane.b32.xlu0 %v663, 64
    %v683 = vpop.permute.xlu0 %682
    %684 = vrot.lane.b32.xlu0 %v664, 64
    %v685 = vpop.permute.xlu0 %684
    %686 = vrot.lane.b32.xlu0 %v665, 64
    %v687 = vpop.permute.xlu0 %686
    %688 = vrot.lane.b32.xlu0 %v666, 64
    %v689 = vpop.permute.xlu0 %688
    %690 = vrot.lane.b32.xlu0 %v667, 64
    %v691 = vpop.permute.xlu0 %690
    %v700 = vmul.f32 %v556, %v677
    %v701 = vmul.f32 %v557, %v679
    %v702 = vmul.f32 %v558, %v681
    %v703 = vmul.f32 %v559, %v683
    %v704 = vmul.f32 %v560, %v685
    %v705 = vmul.f32 %v561, %v687
    %v706 = vmul.f32 %v562, %v689
    %v707 = vmul.f32 %v563, %v691
    %v708 = vmul.f32 %v700, %v402
    %v709 = vmul.f32 %v701, %v402
    %v710 = vmul.f32 %v702, %v402
    %v711 = vmul.f32 %v703, %v402
    %v712 = vmul.f32 %v704, %v402
    %v713 = vmul.f32 %v705, %v402
    %v714 = vmul.f32 %v706, %v402
    %v715 = vmul.f32 %v707, %v402
    %v724 = vrot.slane %v709, 7
    %v725 = vsel %vm421, %v724, %v708
    %v726 = vrot.slane %v710, 6
    %v727 = vsel %vm424, %v726, %v725
    %v728 = vrot.slane %v711, 5
    %v729 = vsel %vm427, %v728, %v727
    %v730 = vrot.slane %v712, 4
    %v731 = vsel %vm430, %v730, %v729
    %v732 = vrot.slane %v713, 3
    %v733 = vsel %vm433, %v732, %v731
    %v734 = vrot.slane %v714, 2
    %v735 = vsel %vm436, %v734, %v733
    %v736 = vrot.slane %v715, 1
    %v737 = vsel %vm439, %v736, %v735
    %738 = vrot.lane.b32.xlu0 %v737, 32
    %v739 = vpop.permute.xlu0 %738
    %v741 = vsel %vm89, %v739, 0.0
    %742 = vadd.xlane.f32.xlu0 %v741
    %v743 = vpop.xlane.xlu0 %742
    %v745 = vperm.slane %v743, %v449
    %747 = vst.msk [vmem:[#allocation3 + $0x1] sm:$0x1] %vm452, %v745
    %v748 = vld [vmem:[#allocation2 + $0x2] sm:$0x1]
    %v749 = vld [vmem:[#allocation2 + $0xa] sm:$0x1]
    %v750 = vld [vmem:[#allocation2 + $0x12] sm:$0x1]
    %v751 = vld [vmem:[#allocation2 + $0x1a] sm:$0x1]
    %v752 = vld [vmem:[#allocation2 + $0x22] sm:$0x1]
    %v753 = vld [vmem:[#allocation2 + $0x2a] sm:$0x1]
    %v754 = vld [vmem:[#allocation2 + $0x32] sm:$0x1]
    %v755 = vld [vmem:[#allocation2 + $0x3a] sm:$0x1]
    %v764 = vrot.slane %v701, 7
    %v765 = vsel %vm421, %v764, %v700
    %v766 = vrot.slane %v702, 6
    %v767 = vsel %vm424, %v766, %v765
    %v768 = vrot.slane %v703, 5
    %v769 = vsel %vm427, %v768, %v767
    %v770 = vrot.slane %v704, 4
    %v771 = vsel %vm430, %v770, %v769
    %v772 = vrot.slane %v705, 3
    %v773 = vsel %vm433, %v772, %v771
    %v774 = vrot.slane %v706, 2
    %v775 = vsel %vm436, %v774, %v773
    %v776 = vrot.slane %v707, 1
    %v777 = vsel %vm439, %v776, %v775
    %778 = vrot.lane.b32.xlu0 %v777, 32
    %v779 = vpop.permute.xlu0 %778
    %v780 = vsel %vm89, %v779, 0
    %782 = vmatpush.msra.mxu0 0.0
    %783 = vmatpush.msra.mxu0 0.0
    %784 = vmatpush.msra.mxu0 0.0
    %785 = vmatpush.msra.mxu0 0.0
    %786 = vmatpush.msra.mxu0 0.0
    %787 = vmatpush.msra.mxu0 0.0
    %788 = vmatpush.msra.mxu0 0.0
    %789 = vmatpush.msra.mxu0 0.0
    %790 = vmatpush.msra.mxu0 0.0
    %791 = vmatpush.msra.mxu0 0.0
    %792 = vmatpush.msra.mxu0 0.0
    %793 = vmatpush.msra.mxu0 0.0
    %794 = vmatpush.msra.mxu0 %v166
    %795 = vmatpush.msra.mxu0 %v165
    %796 = vmatpush.msra.mxu0 %v164
    %797 = vmatpush.msra.mxu0 %v163
    %798 = vmatmul.f32.gmra.mxu0 %v780
    %v799 = vpop.f32.mrf.mxu0
    %v800 = vadd.f32 0.0, %v799
    %801 = vdwg.mxu0
    %v803 = vrot.slane %v800, 1
    %v804 = vrot.slane %v800, 2
    %v805 = vrot.slane %v800, 3
    %v806 = vrot.slane %v800, 4
    %v807 = vrot.slane %v800, 5
    %v808 = vrot.slane %v800, 6
    %v809 = vrot.slane %v800, 7
    %v818 = vadd.f32 %v748, %v800
    %v819 = vadd.f32 %v749, %v803
    %v820 = vadd.f32 %v750, %v804
    %v821 = vadd.f32 %v751, %v805
    %v822 = vadd.f32 %v752, %v806
    %v823 = vadd.f32 %v753, %v807
    %v824 = vadd.f32 %v754, %v808
    %v825 = vadd.f32 %v755, %v809
    %v826 = vmul.f32 %v818, 0.5
    %v827 = vmul.f32 %v819, 0.5
    %v828 = vmul.f32 %v820, 0.5
    %v829 = vmul.f32 %v821, 0.5
    %v830 = vmul.f32 %v822, 0.5
    %v831 = vmul.f32 %v823, 0.5
    %v832 = vmul.f32 %v824, 0.5
    %v833 = vmul.f32 %v825, 0.5
    %v834 = vtanh.pop %v826
    %v835 = vtanh.pop %v827
    %v836 = vtanh.pop %v828
    %v837 = vtanh.pop %v829
    %v838 = vtanh.pop %v830
    %v839 = vtanh.pop %v831
    %v840 = vtanh.pop %v832
    %v841 = vtanh.pop %v833
    %v842 = vadd.f32 %v834, 1.0
    %v843 = vadd.f32 %v835, 1.0
    %v844 = vadd.f32 %v836, 1.0
    %v845 = vadd.f32 %v837, 1.0
    %v846 = vadd.f32 %v838, 1.0
    %v847 = vadd.f32 %v839, 1.0
    %v848 = vadd.f32 %v840, 1.0
    %v849 = vadd.f32 %v841, 1.0
    %v850 = vmul.f32 %v842, 0.5
    %v851 = vmul.f32 %v843, 0.5
    %v852 = vmul.f32 %v844, 0.5
    %v853 = vmul.f32 %v845, 0.5
    %v854 = vmul.f32 %v846, 0.5
    %v855 = vmul.f32 %v847, 0.5
    %v856 = vmul.f32 %v848, 0.5
    %v857 = vmul.f32 %v849, 0.5
    %v858 = vtanh.pop %v818
    %v859 = vtanh.pop %v819
    %v860 = vtanh.pop %v820
    %v861 = vtanh.pop %v821
    %v862 = vtanh.pop %v822
    %v863 = vtanh.pop %v823
    %v864 = vtanh.pop %v824
    %v865 = vtanh.pop %v825
    %v866 = vmul.f32 %v850, %v652
    %v867 = vmul.f32 %v851, %v653
    %v868 = vmul.f32 %v852, %v654
    %v869 = vmul.f32 %v853, %v655
    %v870 = vmul.f32 %v854, %v656
    %v871 = vmul.f32 %v855, %v657
    %v872 = vmul.f32 %v856, %v658
    %v873 = vmul.f32 %v857, %v659
    %882 = vrot.lane.b32.xlu0 %v858, 64
    %v883 = vpop.permute.xlu0 %882
    %884 = vrot.lane.b32.xlu0 %v859, 64
    %v885 = vpop.permute.xlu0 %884
    %886 = vrot.lane.b32.xlu0 %v860, 64
    %v887 = vpop.permute.xlu0 %886
    %888 = vrot.lane.b32.xlu0 %v861, 64
    %v889 = vpop.permute.xlu0 %888
    %890 = vrot.lane.b32.xlu0 %v862, 64
    %v891 = vpop.permute.xlu0 %890
    %892 = vrot.lane.b32.xlu0 %v863, 64
    %v893 = vpop.permute.xlu0 %892
    %894 = vrot.lane.b32.xlu0 %v864, 64
    %v895 = vpop.permute.xlu0 %894
    %896 = vrot.lane.b32.xlu0 %v865, 64
    %v897 = vpop.permute.xlu0 %896
    %v906 = vmul.f32 %v850, %v883
    %v907 = vmul.f32 %v851, %v885
    %v908 = vmul.f32 %v852, %v887
    %v909 = vmul.f32 %v853, %v889
    %v910 = vmul.f32 %v854, %v891
    %v911 = vmul.f32 %v855, %v893
    %v912 = vmul.f32 %v856, %v895
    %v913 = vmul.f32 %v857, %v897
    %922 = vrot.lane.b32.xlu0 %v906, 32
    %v923 = vpop.permute.xlu0 %922
    %924 = vrot.lane.b32.xlu0 %v907, 32
    %v925 = vpop.permute.xlu0 %924
    %926 = vrot.lane.b32.xlu0 %v908, 32
    %v927 = vpop.permute.xlu0 %926
    %928 = vrot.lane.b32.xlu0 %v909, 32
    %v929 = vpop.permute.xlu0 %928
    %930 = vrot.lane.b32.xlu0 %v910, 32
    %v931 = vpop.permute.xlu0 %930
    %932 = vrot.lane.b32.xlu0 %v911, 32
    %v933 = vpop.permute.xlu0 %932
    %934 = vrot.lane.b32.xlu0 %v912, 32
    %v935 = vpop.permute.xlu0 %934
    %936 = vrot.lane.b32.xlu0 %v913, 32
    %v937 = vpop.permute.xlu0 %936
    %v946 = vadd.f32 %v866, %v923
    %v947 = vadd.f32 %v867, %v925
    %v948 = vadd.f32 %v868, %v927
    %v949 = vadd.f32 %v869, %v929
    %v950 = vadd.f32 %v870, %v931
    %v951 = vadd.f32 %v871, %v933
    %v952 = vadd.f32 %v872, %v935
    %v953 = vadd.f32 %v873, %v937
    %v954 = vtanh.pop %v946
    %v955 = vtanh.pop %v947
    %v956 = vtanh.pop %v948
    %v957 = vtanh.pop %v949
    %v958 = vtanh.pop %v950
    %v959 = vtanh.pop %v951
    %v960 = vtanh.pop %v952
    %v961 = vtanh.pop %v953
    %970 = vrot.lane.b32.xlu0 %v954, 64
    %v971 = vpop.permute.xlu0 %970
    %972 = vrot.lane.b32.xlu0 %v955, 64
    %v973 = vpop.permute.xlu0 %972
    %974 = vrot.lane.b32.xlu0 %v956, 64
    %v975 = vpop.permute.xlu0 %974
    %976 = vrot.lane.b32.xlu0 %v957, 64
    %v977 = vpop.permute.xlu0 %976
    %978 = vrot.lane.b32.xlu0 %v958, 64
    %v979 = vpop.permute.xlu0 %978
    %980 = vrot.lane.b32.xlu0 %v959, 64
    %v981 = vpop.permute.xlu0 %980
    %982 = vrot.lane.b32.xlu0 %v960, 64
    %v983 = vpop.permute.xlu0 %982
    %984 = vrot.lane.b32.xlu0 %v961, 64
    %v985 = vpop.permute.xlu0 %984
    %v994 = vmul.f32 %v850, %v971
    %v995 = vmul.f32 %v851, %v973
    %v996 = vmul.f32 %v852, %v975
    %v997 = vmul.f32 %v853, %v977
    %v998 = vmul.f32 %v854, %v979
    %v999 = vmul.f32 %v855, %v981
    %v1000 = vmul.f32 %v856, %v983
    %v1001 = vmul.f32 %v857, %v985
    %v1002 = vmul.f32 %v994, %v402
    %v1003 = vmul.f32 %v995, %v402
    %v1004 = vmul.f32 %v996, %v402
    %v1005 = vmul.f32 %v997, %v402
    %v1006 = vmul.f32 %v998, %v402
    %v1007 = vmul.f32 %v999, %v402
    %v1008 = vmul.f32 %v1000, %v402
    %v1009 = vmul.f32 %v1001, %v402
    %v1018 = vrot.slane %v1003, 7
    %v1019 = vsel %vm421, %v1018, %v1002
    %v1020 = vrot.slane %v1004, 6
    %v1021 = vsel %vm424, %v1020, %v1019
    %v1022 = vrot.slane %v1005, 5
    %v1023 = vsel %vm427, %v1022, %v1021
    %v1024 = vrot.slane %v1006, 4
    %v1025 = vsel %vm430, %v1024, %v1023
    %v1026 = vrot.slane %v1007, 3
    %v1027 = vsel %vm433, %v1026, %v1025
    %v1028 = vrot.slane %v1008, 2
    %v1029 = vsel %vm436, %v1028, %v1027
    %v1030 = vrot.slane %v1009, 1
    %v1031 = vsel %vm439, %v1030, %v1029
    %1032 = vrot.lane.b32.xlu0 %v1031, 32
    %v1033 = vpop.permute.xlu0 %1032
    %v1035 = vsel %vm89, %v1033, 0.0
    %1036 = vadd.xlane.f32.xlu0 %v1035
    %v1037 = vpop.xlane.xlu0 %1036
    %v1039 = vperm.slane %v1037, %v449
    %1041 = vst.msk [vmem:[#allocation3 + $0x2] sm:$0x1] %vm452, %v1039
    %v1042 = vld [vmem:[#allocation2 + $0x3] sm:$0x1]
    %v1043 = vld [vmem:[#allocation2 + $0xb] sm:$0x1]
    %v1044 = vld [vmem:[#allocation2 + $0x13] sm:$0x1]
    %v1045 = vld [vmem:[#allocation2 + $0x1b] sm:$0x1]
    %v1046 = vld [vmem:[#allocation2 + $0x23] sm:$0x1]
    %v1047 = vld [vmem:[#allocation2 + $0x2b] sm:$0x1]
    %v1048 = vld [vmem:[#allocation2 + $0x33] sm:$0x1]
    %v1049 = vld [vmem:[#allocation2 + $0x3b] sm:$0x1]
    %v1058 = vrot.slane %v995, 7
    %v1059 = vsel %vm421, %v1058, %v994
    %v1060 = vrot.slane %v996, 6
    %v1061 = vsel %vm424, %v1060, %v1059
    %v1062 = vrot.slane %v997, 5
    %v1063 = vsel %vm427, %v1062, %v1061
    %v1064 = vrot.slane %v998, 4
    %v1065 = vsel %vm430, %v1064, %v1063
    %v1066 = vrot.slane %v999, 3
    %v1067 = vsel %vm433, %v1066, %v1065
    %v1068 = vrot.slane %v1000, 2
    %v1069 = vsel %vm436, %v1068, %v1067
    %v1070 = vrot.slane %v1001, 1
    %v1071 = vsel %vm439, %v1070, %v1069
    %1072 = vrot.lane.b32.xlu0 %v1071, 32
    %v1073 = vpop.permute.xlu0 %1072
    %v1074 = vsel %vm89, %v1073, 0
    %1076 = vmatpush.msra.mxu0 0.0
    %1077 = vmatpush.msra.mxu0 0.0
    %1078 = vmatpush.msra.mxu0 0.0
    %1079 = vmatpush.msra.mxu0 0.0
    %1080 = vmatpush.msra.mxu0 0.0
    %1081 = vmatpush.msra.mxu0 0.0
    %1082 = vmatpush.msra.mxu0 0.0
    %1083 = vmatpush.msra.mxu0 0.0
    %1084 = vmatpush.msra.mxu0 0.0
    %1085 = vmatpush.msra.mxu0 0.0
    %1086 = vmatpush.msra.mxu0 0.0
    %1087 = vmatpush.msra.mxu0 0.0
    %1088 = vmatpush.msra.mxu0 %v166
    %1089 = vmatpush.msra.mxu0 %v165
    %1090 = vmatpush.msra.mxu0 %v164
    %1091 = vmatpush.msra.mxu0 %v163
    %1092 = vmatmul.f32.gmra.mxu0 %v1074
    %v1093 = vpop.f32.mrf.mxu0
    %v1094 = vadd.f32 0.0, %v1093
    %1095 = vdwg.mxu0
    %v1097 = vrot.slane %v1094, 1
    %v1098 = vrot.slane %v1094, 2
    %v1099 = vrot.slane %v1094, 3
    %v1100 = vrot.slane %v1094, 4
    %v1101 = vrot.slane %v1094, 5
    %v1102 = vrot.slane %v1094, 6
    %v1103 = vrot.slane %v1094, 7
    %v1112 = vadd.f32 %v1042, %v1094
    %v1113 = vadd.f32 %v1043, %v1097
    %v1114 = vadd.f32 %v1044, %v1098
    %v1115 = vadd.f32 %v1045, %v1099
    %v1116 = vadd.f32 %v1046, %v1100
    %v1117 = vadd.f32 %v1047, %v1101
    %v1118 = vadd.f32 %v1048, %v1102
    %v1119 = vadd.f32 %v1049, %v1103
    %v1120 = vmul.f32 %v1112, 0.5
    %v1121 = vmul.f32 %v1113, 0.5
    %v1122 = vmul.f32 %v1114, 0.5
    %v1123 = vmul.f32 %v1115, 0.5
    %v1124 = vmul.f32 %v1116, 0.5
    %v1125 = vmul.f32 %v1117, 0.5
    %v1126 = vmul.f32 %v1118, 0.5
    %v1127 = vmul.f32 %v1119, 0.5
    %v1128 = vtanh.pop %v1120
    %v1129 = vtanh.pop %v1121
    %v1130 = vtanh.pop %v1122
    %v1131 = vtanh.pop %v1123
    %v1132 = vtanh.pop %v1124
    %v1133 = vtanh.pop %v1125
    %v1134 = vtanh.pop %v1126
    %v1135 = vtanh.pop %v1127
    %v1136 = vadd.f32 %v1128, 1.0
    %v1137 = vadd.f32 %v1129, 1.0
    %v1138 = vadd.f32 %v1130, 1.0
    %v1139 = vadd.f32 %v1131, 1.0
    %v1140 = vadd.f32 %v1132, 1.0
    %v1141 = vadd.f32 %v1133, 1.0
    %v1142 = vadd.f32 %v1134, 1.0
    %v1143 = vadd.f32 %v1135, 1.0
    %v1144 = vmul.f32 %v1136, 0.5
    %v1145 = vmul.f32 %v1137, 0.5
    %v1146 = vmul.f32 %v1138, 0.5
    %v1147 = vmul.f32 %v1139, 0.5
    %v1148 = vmul.f32 %v1140, 0.5
    %v1149 = vmul.f32 %v1141, 0.5
    %v1150 = vmul.f32 %v1142, 0.5
    %v1151 = vmul.f32 %v1143, 0.5
    %v1152 = vtanh.pop %v1112
    %v1153 = vtanh.pop %v1113
    %v1154 = vtanh.pop %v1114
    %v1155 = vtanh.pop %v1115
    %v1156 = vtanh.pop %v1116
    %v1157 = vtanh.pop %v1117
    %v1158 = vtanh.pop %v1118
    %v1159 = vtanh.pop %v1119
    %v1160 = vmul.f32 %v1144, %v946
    %v1161 = vmul.f32 %v1145, %v947
    %v1162 = vmul.f32 %v1146, %v948
    %v1163 = vmul.f32 %v1147, %v949
    %v1164 = vmul.f32 %v1148, %v950
    %v1165 = vmul.f32 %v1149, %v951
    %v1166 = vmul.f32 %v1150, %v952
    %v1167 = vmul.f32 %v1151, %v953
    %1176 = vrot.lane.b32.xlu0 %v1152, 64
    %v1177 = vpop.permute.xlu0 %1176
    %1178 = vrot.lane.b32.xlu0 %v1153, 64
    %v1179 = vpop.permute.xlu0 %1178
    %1180 = vrot.lane.b32.xlu0 %v1154, 64
    %v1181 = vpop.permute.xlu0 %1180
    %1182 = vrot.lane.b32.xlu0 %v1155, 64
    %v1183 = vpop.permute.xlu0 %1182
    %1184 = vrot.lane.b32.xlu0 %v1156, 64
    %v1185 = vpop.permute.xlu0 %1184
    %1186 = vrot.lane.b32.xlu0 %v1157, 64
    %v1187 = vpop.permute.xlu0 %1186
    %1188 = vrot.lane.b32.xlu0 %v1158, 64
    %v1189 = vpop.permute.xlu0 %1188
    %1190 = vrot.lane.b32.xlu0 %v1159, 64
    %v1191 = vpop.permute.xlu0 %1190
    %v1200 = vmul.f32 %v1144, %v1177
    %v1201 = vmul.f32 %v1145, %v1179
    %v1202 = vmul.f32 %v1146, %v1181
    %v1203 = vmul.f32 %v1147, %v1183
    %v1204 = vmul.f32 %v1148, %v1185
    %v1205 = vmul.f32 %v1149, %v1187
    %v1206 = vmul.f32 %v1150, %v1189
    %v1207 = vmul.f32 %v1151, %v1191
    %1216 = vrot.lane.b32.xlu0 %v1200, 32
    %v1217 = vpop.permute.xlu0 %1216
    %1218 = vrot.lane.b32.xlu0 %v1201, 32
    %v1219 = vpop.permute.xlu0 %1218
    %1220 = vrot.lane.b32.xlu0 %v1202, 32
    %v1221 = vpop.permute.xlu0 %1220
    %1222 = vrot.lane.b32.xlu0 %v1203, 32
    %v1223 = vpop.permute.xlu0 %1222
    %1224 = vrot.lane.b32.xlu0 %v1204, 32
    %v1225 = vpop.permute.xlu0 %1224
    %1226 = vrot.lane.b32.xlu0 %v1205, 32
    %v1227 = vpop.permute.xlu0 %1226
    %1228 = vrot.lane.b32.xlu0 %v1206, 32
    %v1229 = vpop.permute.xlu0 %1228
    %1230 = vrot.lane.b32.xlu0 %v1207, 32
    %v1231 = vpop.permute.xlu0 %1230
    %v1240 = vadd.f32 %v1160, %v1217
    %v1241 = vadd.f32 %v1161, %v1219
    %v1242 = vadd.f32 %v1162, %v1221
    %v1243 = vadd.f32 %v1163, %v1223
    %v1244 = vadd.f32 %v1164, %v1225
    %v1245 = vadd.f32 %v1165, %v1227
    %v1246 = vadd.f32 %v1166, %v1229
    %v1247 = vadd.f32 %v1167, %v1231
    %v1248 = vtanh.pop %v1240
    %v1249 = vtanh.pop %v1241
    %v1250 = vtanh.pop %v1242
    %v1251 = vtanh.pop %v1243
    %v1252 = vtanh.pop %v1244
    %v1253 = vtanh.pop %v1245
    %v1254 = vtanh.pop %v1246
    %v1255 = vtanh.pop %v1247
    %1264 = vrot.lane.b32.xlu0 %v1248, 64
    %v1265 = vpop.permute.xlu0 %1264
    %1266 = vrot.lane.b32.xlu0 %v1249, 64
    %v1267 = vpop.permute.xlu0 %1266
    %1268 = vrot.lane.b32.xlu0 %v1250, 64
    %v1269 = vpop.permute.xlu0 %1268
    %1270 = vrot.lane.b32.xlu0 %v1251, 64
    %v1271 = vpop.permute.xlu0 %1270
    %1272 = vrot.lane.b32.xlu0 %v1252, 64
    %v1273 = vpop.permute.xlu0 %1272
    %1274 = vrot.lane.b32.xlu0 %v1253, 64
    %v1275 = vpop.permute.xlu0 %1274
    %1276 = vrot.lane.b32.xlu0 %v1254, 64
    %v1277 = vpop.permute.xlu0 %1276
    %1278 = vrot.lane.b32.xlu0 %v1255, 64
    %v1279 = vpop.permute.xlu0 %1278
    %v1288 = vmul.f32 %v1144, %v1265
    %v1289 = vmul.f32 %v1145, %v1267
    %v1290 = vmul.f32 %v1146, %v1269
    %v1291 = vmul.f32 %v1147, %v1271
    %v1292 = vmul.f32 %v1148, %v1273
    %v1293 = vmul.f32 %v1149, %v1275
    %v1294 = vmul.f32 %v1150, %v1277
    %v1295 = vmul.f32 %v1151, %v1279
    %v1296 = vmul.f32 %v1288, %v402
    %v1297 = vmul.f32 %v1289, %v402
    %v1298 = vmul.f32 %v1290, %v402
    %v1299 = vmul.f32 %v1291, %v402
    %v1300 = vmul.f32 %v1292, %v402
    %v1301 = vmul.f32 %v1293, %v402
    %v1302 = vmul.f32 %v1294, %v402
    %v1303 = vmul.f32 %v1295, %v402
    %v1312 = vrot.slane %v1297, 7
    %v1313 = vsel %vm421, %v1312, %v1296
    %v1314 = vrot.slane %v1298, 6
    %v1315 = vsel %vm424, %v1314, %v1313
    %v1316 = vrot.slane %v1299, 5
    %v1317 = vsel %vm427, %v1316, %v1315
    %v1318 = vrot.slane %v1300, 4
    %v1319 = vsel %vm430, %v1318, %v1317
    %v1320 = vrot.slane %v1301, 3
    %v1321 = vsel %vm433, %v1320, %v1319
    %v1322 = vrot.slane %v1302, 2
    %v1323 = vsel %vm436, %v1322, %v1321
    %v1324 = vrot.slane %v1303, 1
    %v1325 = vsel %vm439, %v1324, %v1323
    %1326 = vrot.lane.b32.xlu0 %v1325, 32
    %v1327 = vpop.permute.xlu0 %1326
    %v1329 = vsel %vm89, %v1327, 0.0
    %1330 = vadd.xlane.f32.xlu0 %v1329
    %v1331 = vpop.xlane.xlu0 %1330
    %v1333 = vperm.slane %v1331, %v449
    %1335 = vst.msk [vmem:[#allocation3 + $0x3] sm:$0x1] %vm452, %v1333
    %v1336 = vld [vmem:[#allocation2 + $0x4] sm:$0x1]
    %v1337 = vld [vmem:[#allocation2 + $0xc] sm:$0x1]
    %v1338 = vld [vmem:[#allocation2 + $0x14] sm:$0x1]
    %v1339 = vld [vmem:[#allocation2 + $0x1c] sm:$0x1]
    %v1340 = vld [vmem:[#allocation2 + $0x24] sm:$0x1]
    %v1341 = vld [vmem:[#allocation2 + $0x2c] sm:$0x1]
    %v1342 = vld [vmem:[#allocation2 + $0x34] sm:$0x1]
    %v1343 = vld [vmem:[#allocation2 + $0x3c] sm:$0x1]
    %v1352 = vrot.slane %v1289, 7
    %v1353 = vsel %vm421, %v1352, %v1288
    %v1354 = vrot.slane %v1290, 6
    %v1355 = vsel %vm424, %v1354, %v1353
    %v1356 = vrot.slane %v1291, 5
    %v1357 = vsel %vm427, %v1356, %v1355
    %v1358 = vrot.slane %v1292, 4
    %v1359 = vsel %vm430, %v1358, %v1357
    %v1360 = vrot.slane %v1293, 3
    %v1361 = vsel %vm433, %v1360, %v1359
    %v1362 = vrot.slane %v1294, 2
    %v1363 = vsel %vm436, %v1362, %v1361
    %v1364 = vrot.slane %v1295, 1
    %v1365 = vsel %vm439, %v1364, %v1363
    %1366 = vrot.lane.b32.xlu0 %v1365, 32
    %v1367 = vpop.permute.xlu0 %1366
    %v1368 = vsel %vm89, %v1367, 0
    %1370 = vmatpush.msra.mxu0 0.0
    %1371 = vmatpush.msra.mxu0 0.0
    %1372 = vmatpush.msra.mxu0 0.0
    %1373 = vmatpush.msra.mxu0 0.0
    %1374 = vmatpush.msra.mxu0 0.0
    %1375 = vmatpush.msra.mxu0 0.0
    %1376 = vmatpush.msra.mxu0 0.0
    %1377 = vmatpush.msra.mxu0 0.0
    %1378 = vmatpush.msra.mxu0 0.0
    %1379 = vmatpush.msra.mxu0 0.0
    %1380 = vmatpush.msra.mxu0 0.0
    %1381 = vmatpush.msra.mxu0 0.0
    %1382 = vmatpush.msra.mxu0 %v166
    %1383 = vmatpush.msra.mxu0 %v165
    %1384 = vmatpush.msra.mxu0 %v164
    %1385 = vmatpush.msra.mxu0 %v163
    %1386 = vmatmul.f32.gmra.mxu0 %v1368
    %v1387 = vpop.f32.mrf.mxu0
    %v1388 = vadd.f32 0.0, %v1387
    %1389 = vdwg.mxu0
    %v1391 = vrot.slane %v1388, 1
    %v1392 = vrot.slane %v1388, 2
    %v1393 = vrot.slane %v1388, 3
    %v1394 = vrot.slane %v1388, 4
    %v1395 = vrot.slane %v1388, 5
    %v1396 = vrot.slane %v1388, 6
    %v1397 = vrot.slane %v1388, 7
    %v1406 = vadd.f32 %v1336, %v1388
    %v1407 = vadd.f32 %v1337, %v1391
    %v1408 = vadd.f32 %v1338, %v1392
    %v1409 = vadd.f32 %v1339, %v1393
    %v1410 = vadd.f32 %v1340, %v1394
    %v1411 = vadd.f32 %v1341, %v1395
    %v1412 = vadd.f32 %v1342, %v1396
    %v1413 = vadd.f32 %v1343, %v1397
    %v1414 = vmul.f32 %v1406, 0.5
    %v1415 = vmul.f32 %v1407, 0.5
    %v1416 = vmul.f32 %v1408, 0.5
    %v1417 = vmul.f32 %v1409, 0.5
    %v1418 = vmul.f32 %v1410, 0.5
    %v1419 = vmul.f32 %v1411, 0.5
    %v1420 = vmul.f32 %v1412, 0.5
    %v1421 = vmul.f32 %v1413, 0.5
    %v1422 = vtanh.pop %v1414
    %v1423 = vtanh.pop %v1415
    %v1424 = vtanh.pop %v1416
    %v1425 = vtanh.pop %v1417
    %v1426 = vtanh.pop %v1418
    %v1427 = vtanh.pop %v1419
    %v1428 = vtanh.pop %v1420
    %v1429 = vtanh.pop %v1421
    %v1430 = vadd.f32 %v1422, 1.0
    %v1431 = vadd.f32 %v1423, 1.0
    %v1432 = vadd.f32 %v1424, 1.0
    %v1433 = vadd.f32 %v1425, 1.0
    %v1434 = vadd.f32 %v1426, 1.0
    %v1435 = vadd.f32 %v1427, 1.0
    %v1436 = vadd.f32 %v1428, 1.0
    %v1437 = vadd.f32 %v1429, 1.0
    %v1438 = vmul.f32 %v1430, 0.5
    %v1439 = vmul.f32 %v1431, 0.5
    %v1440 = vmul.f32 %v1432, 0.5
    %v1441 = vmul.f32 %v1433, 0.5
    %v1442 = vmul.f32 %v1434, 0.5
    %v1443 = vmul.f32 %v1435, 0.5
    %v1444 = vmul.f32 %v1436, 0.5
    %v1445 = vmul.f32 %v1437, 0.5
    %v1446 = vtanh.pop %v1406
    %v1447 = vtanh.pop %v1407
    %v1448 = vtanh.pop %v1408
    %v1449 = vtanh.pop %v1409
    %v1450 = vtanh.pop %v1410
    %v1451 = vtanh.pop %v1411
    %v1452 = vtanh.pop %v1412
    %v1453 = vtanh.pop %v1413
    %v1454 = vmul.f32 %v1438, %v1240
    %v1455 = vmul.f32 %v1439, %v1241
    %v1456 = vmul.f32 %v1440, %v1242
    %v1457 = vmul.f32 %v1441, %v1243
    %v1458 = vmul.f32 %v1442, %v1244
    %v1459 = vmul.f32 %v1443, %v1245
    %v1460 = vmul.f32 %v1444, %v1246
    %v1461 = vmul.f32 %v1445, %v1247
    %1470 = vrot.lane.b32.xlu0 %v1446, 64
    %v1471 = vpop.permute.xlu0 %1470
    %1472 = vrot.lane.b32.xlu0 %v1447, 64
    %v1473 = vpop.permute.xlu0 %1472
    %1474 = vrot.lane.b32.xlu0 %v1448, 64
    %v1475 = vpop.permute.xlu0 %1474
    %1476 = vrot.lane.b32.xlu0 %v1449, 64
    %v1477 = vpop.permute.xlu0 %1476
    %1478 = vrot.lane.b32.xlu0 %v1450, 64
    %v1479 = vpop.permute.xlu0 %1478
    %1480 = vrot.lane.b32.xlu0 %v1451, 64
    %v1481 = vpop.permute.xlu0 %1480
    %1482 = vrot.lane.b32.xlu0 %v1452, 64
    %v1483 = vpop.permute.xlu0 %1482
    %1484 = vrot.lane.b32.xlu0 %v1453, 64
    %v1485 = vpop.permute.xlu0 %1484
    %v1494 = vmul.f32 %v1438, %v1471
    %v1495 = vmul.f32 %v1439, %v1473
    %v1496 = vmul.f32 %v1440, %v1475
    %v1497 = vmul.f32 %v1441, %v1477
    %v1498 = vmul.f32 %v1442, %v1479
    %v1499 = vmul.f32 %v1443, %v1481
    %v1500 = vmul.f32 %v1444, %v1483
    %v1501 = vmul.f32 %v1445, %v1485
    %1510 = vrot.lane.b32.xlu0 %v1494, 32
    %v1511 = vpop.permute.xlu0 %1510
    %1512 = vrot.lane.b32.xlu0 %v1495, 32
    %v1513 = vpop.permute.xlu0 %1512
    %1514 = vrot.lane.b32.xlu0 %v1496, 32
    %v1515 = vpop.permute.xlu0 %1514
    %1516 = vrot.lane.b32.xlu0 %v1497, 32
    %v1517 = vpop.permute.xlu0 %1516
    %1518 = vrot.lane.b32.xlu0 %v1498, 32
    %v1519 = vpop.permute.xlu0 %1518
    %1520 = vrot.lane.b32.xlu0 %v1499, 32
    %v1521 = vpop.permute.xlu0 %1520
    %1522 = vrot.lane.b32.xlu0 %v1500, 32
    %v1523 = vpop.permute.xlu0 %1522
    %1524 = vrot.lane.b32.xlu0 %v1501, 32
    %v1525 = vpop.permute.xlu0 %1524
    %v1534 = vadd.f32 %v1454, %v1511
    %v1535 = vadd.f32 %v1455, %v1513
    %v1536 = vadd.f32 %v1456, %v1515
    %v1537 = vadd.f32 %v1457, %v1517
    %v1538 = vadd.f32 %v1458, %v1519
    %v1539 = vadd.f32 %v1459, %v1521
    %v1540 = vadd.f32 %v1460, %v1523
    %v1541 = vadd.f32 %v1461, %v1525
    %v1542 = vtanh.pop %v1534
    %v1543 = vtanh.pop %v1535
    %v1544 = vtanh.pop %v1536
    %v1545 = vtanh.pop %v1537
    %v1546 = vtanh.pop %v1538
    %v1547 = vtanh.pop %v1539
    %v1548 = vtanh.pop %v1540
    %v1549 = vtanh.pop %v1541
    %1558 = vrot.lane.b32.xlu0 %v1542, 64
    %v1559 = vpop.permute.xlu0 %1558
    %1560 = vrot.lane.b32.xlu0 %v1543, 64
    %v1561 = vpop.permute.xlu0 %1560
    %1562 = vrot.lane.b32.xlu0 %v1544, 64
    %v1563 = vpop.permute.xlu0 %1562
    %1564 = vrot.lane.b32.xlu0 %v1545, 64
    %v1565 = vpop.permute.xlu0 %1564
    %1566 = vrot.lane.b32.xlu0 %v1546, 64
    %v1567 = vpop.permute.xlu0 %1566
    %1568 = vrot.lane.b32.xlu0 %v1547, 64
    %v1569 = vpop.permute.xlu0 %1568
    %1570 = vrot.lane.b32.xlu0 %v1548, 64
    %v1571 = vpop.permute.xlu0 %1570
    %1572 = vrot.lane.b32.xlu0 %v1549, 64
    %v1573 = vpop.permute.xlu0 %1572
    %v1582 = vmul.f32 %v1438, %v1559
    %v1583 = vmul.f32 %v1439, %v1561
    %v1584 = vmul.f32 %v1440, %v1563
    %v1585 = vmul.f32 %v1441, %v1565
    %v1586 = vmul.f32 %v1442, %v1567
    %v1587 = vmul.f32 %v1443, %v1569
    %v1588 = vmul.f32 %v1444, %v1571
    %v1589 = vmul.f32 %v1445, %v1573
    %v1590 = vmul.f32 %v1582, %v402
    %v1591 = vmul.f32 %v1583, %v402
    %v1592 = vmul.f32 %v1584, %v402
    %v1593 = vmul.f32 %v1585, %v402
    %v1594 = vmul.f32 %v1586, %v402
    %v1595 = vmul.f32 %v1587, %v402
    %v1596 = vmul.f32 %v1588, %v402
    %v1597 = vmul.f32 %v1589, %v402
    %v1606 = vrot.slane %v1591, 7
    %v1607 = vsel %vm421, %v1606, %v1590
    %v1608 = vrot.slane %v1592, 6
    %v1609 = vsel %vm424, %v1608, %v1607
    %v1610 = vrot.slane %v1593, 5
    %v1611 = vsel %vm427, %v1610, %v1609
    %v1612 = vrot.slane %v1594, 4
    %v1613 = vsel %vm430, %v1612, %v1611
    %v1614 = vrot.slane %v1595, 3
    %v1615 = vsel %vm433, %v1614, %v1613
    %v1616 = vrot.slane %v1596, 2
    %v1617 = vsel %vm436, %v1616, %v1615
    %v1618 = vrot.slane %v1597, 1
    %v1619 = vsel %vm439, %v1618, %v1617
    %1620 = vrot.lane.b32.xlu0 %v1619, 32
    %v1621 = vpop.permute.xlu0 %1620
    %v1623 = vsel %vm89, %v1621, 0.0
    %1624 = vadd.xlane.f32.xlu0 %v1623
    %v1625 = vpop.xlane.xlu0 %1624
    %v1627 = vperm.slane %v1625, %v449
    %1629 = vst.msk [vmem:[#allocation3 + $0x4] sm:$0x1] %vm452, %v1627
    %v1630 = vld [vmem:[#allocation2 + $0x5] sm:$0x1]
    %v1631 = vld [vmem:[#allocation2 + $0xd] sm:$0x1]
    %v1632 = vld [vmem:[#allocation2 + $0x15] sm:$0x1]
    %v1633 = vld [vmem:[#allocation2 + $0x1d] sm:$0x1]
    %v1634 = vld [vmem:[#allocation2 + $0x25] sm:$0x1]
    %v1635 = vld [vmem:[#allocation2 + $0x2d] sm:$0x1]
    %v1636 = vld [vmem:[#allocation2 + $0x35] sm:$0x1]
    %v1637 = vld [vmem:[#allocation2 + $0x3d] sm:$0x1]
    %v1646 = vrot.slane %v1583, 7
    %v1647 = vsel %vm421, %v1646, %v1582
    %v1648 = vrot.slane %v1584, 6
    %v1649 = vsel %vm424, %v1648, %v1647
    %v1650 = vrot.slane %v1585, 5
    %v1651 = vsel %vm427, %v1650, %v1649
    %v1652 = vrot.slane %v1586, 4
    %v1653 = vsel %vm430, %v1652, %v1651
    %v1654 = vrot.slane %v1587, 3
    %v1655 = vsel %vm433, %v1654, %v1653
    %v1656 = vrot.slane %v1588, 2
    %v1657 = vsel %vm436, %v1656, %v1655
    %v1658 = vrot.slane %v1589, 1
    %v1659 = vsel %vm439, %v1658, %v1657
    %1660 = vrot.lane.b32.xlu0 %v1659, 32
    %v1661 = vpop.permute.xlu0 %1660
    %v1662 = vsel %vm89, %v1661, 0
    %1664 = vmatpush.msra.mxu0 0.0
    %1665 = vmatpush.msra.mxu0 0.0
    %1666 = vmatpush.msra.mxu0 0.0
    %1667 = vmatpush.msra.mxu0 0.0
    %1668 = vmatpush.msra.mxu0 0.0
    %1669 = vmatpush.msra.mxu0 0.0
    %1670 = vmatpush.msra.mxu0 0.0
    %1671 = vmatpush.msra.mxu0 0.0
    %1672 = vmatpush.msra.mxu0 0.0
    %1673 = vmatpush.msra.mxu0 0.0
    %1674 = vmatpush.msra.mxu0 0.0
    %1675 = vmatpush.msra.mxu0 0.0
    %1676 = vmatpush.msra.mxu0 %v166
    %1677 = vmatpush.msra.mxu0 %v165
    %1678 = vmatpush.msra.mxu0 %v164
    %1679 = vmatpush.msra.mxu0 %v163
    %1680 = vmatmul.f32.gmra.mxu0 %v1662
    %v1681 = vpop.f32.mrf.mxu0
    %v1682 = vadd.f32 0.0, %v1681
    %1683 = vdwg.mxu0
    %v1685 = vrot.slane %v1682, 1
    %v1686 = vrot.slane %v1682, 2
    %v1687 = vrot.slane %v1682, 3
    %v1688 = vrot.slane %v1682, 4
    %v1689 = vrot.slane %v1682, 5
    %v1690 = vrot.slane %v1682, 6
    %v1691 = vrot.slane %v1682, 7
    %v1700 = vadd.f32 %v1630, %v1682
    %v1701 = vadd.f32 %v1631, %v1685
    %v1702 = vadd.f32 %v1632, %v1686
    %v1703 = vadd.f32 %v1633, %v1687
    %v1704 = vadd.f32 %v1634, %v1688
    %v1705 = vadd.f32 %v1635, %v1689
    %v1706 = vadd.f32 %v1636, %v1690
    %v1707 = vadd.f32 %v1637, %v1691
    %v1708 = vmul.f32 %v1700, 0.5
    %v1709 = vmul.f32 %v1701, 0.5
    %v1710 = vmul.f32 %v1702, 0.5
    %v1711 = vmul.f32 %v1703, 0.5
    %v1712 = vmul.f32 %v1704, 0.5
    %v1713 = vmul.f32 %v1705, 0.5
    %v1714 = vmul.f32 %v1706, 0.5
    %v1715 = vmul.f32 %v1707, 0.5
    %v1716 = vtanh.pop %v1708
    %v1717 = vtanh.pop %v1709
    %v1718 = vtanh.pop %v1710
    %v1719 = vtanh.pop %v1711
    %v1720 = vtanh.pop %v1712
    %v1721 = vtanh.pop %v1713
    %v1722 = vtanh.pop %v1714
    %v1723 = vtanh.pop %v1715
    %v1724 = vadd.f32 %v1716, 1.0
    %v1725 = vadd.f32 %v1717, 1.0
    %v1726 = vadd.f32 %v1718, 1.0
    %v1727 = vadd.f32 %v1719, 1.0
    %v1728 = vadd.f32 %v1720, 1.0
    %v1729 = vadd.f32 %v1721, 1.0
    %v1730 = vadd.f32 %v1722, 1.0
    %v1731 = vadd.f32 %v1723, 1.0
    %v1732 = vmul.f32 %v1724, 0.5
    %v1733 = vmul.f32 %v1725, 0.5
    %v1734 = vmul.f32 %v1726, 0.5
    %v1735 = vmul.f32 %v1727, 0.5
    %v1736 = vmul.f32 %v1728, 0.5
    %v1737 = vmul.f32 %v1729, 0.5
    %v1738 = vmul.f32 %v1730, 0.5
    %v1739 = vmul.f32 %v1731, 0.5
    %v1740 = vtanh.pop %v1700
    %v1741 = vtanh.pop %v1701
    %v1742 = vtanh.pop %v1702
    %v1743 = vtanh.pop %v1703
    %v1744 = vtanh.pop %v1704
    %v1745 = vtanh.pop %v1705
    %v1746 = vtanh.pop %v1706
    %v1747 = vtanh.pop %v1707
    %v1748 = vmul.f32 %v1732, %v1534
    %v1749 = vmul.f32 %v1733, %v1535
    %v1750 = vmul.f32 %v1734, %v1536
    %v1751 = vmul.f32 %v1735, %v1537
    %v1752 = vmul.f32 %v1736, %v1538
    %v1753 = vmul.f32 %v1737, %v1539
    %v1754 = vmul.f32 %v1738, %v1540
    %v1755 = vmul.f32 %v1739, %v1541
    %1764 = vrot.lane.b32.xlu0 %v1740, 64
    %v1765 = vpop.permute.xlu0 %1764
    %1766 = vrot.lane.b32.xlu0 %v1741, 64
    %v1767 = vpop.permute.xlu0 %1766
    %1768 = vrot.lane.b32.xlu0 %v1742, 64
    %v1769 = vpop.permute.xlu0 %1768
    %1770 = vrot.lane.b32.xlu0 %v1743, 64
    %v1771 = vpop.permute.xlu0 %1770
    %1772 = vrot.lane.b32.xlu0 %v1744, 64
    %v1773 = vpop.permute.xlu0 %1772
    %1774 = vrot.lane.b32.xlu0 %v1745, 64
    %v1775 = vpop.permute.xlu0 %1774
    %1776 = vrot.lane.b32.xlu0 %v1746, 64
    %v1777 = vpop.permute.xlu0 %1776
    %1778 = vrot.lane.b32.xlu0 %v1747, 64
    %v1779 = vpop.permute.xlu0 %1778
    %v1788 = vmul.f32 %v1732, %v1765
    %v1789 = vmul.f32 %v1733, %v1767
    %v1790 = vmul.f32 %v1734, %v1769
    %v1791 = vmul.f32 %v1735, %v1771
    %v1792 = vmul.f32 %v1736, %v1773
    %v1793 = vmul.f32 %v1737, %v1775
    %v1794 = vmul.f32 %v1738, %v1777
    %v1795 = vmul.f32 %v1739, %v1779
    %1804 = vrot.lane.b32.xlu0 %v1788, 32
    %v1805 = vpop.permute.xlu0 %1804
    %1806 = vrot.lane.b32.xlu0 %v1789, 32
    %v1807 = vpop.permute.xlu0 %1806
    %1808 = vrot.lane.b32.xlu0 %v1790, 32
    %v1809 = vpop.permute.xlu0 %1808
    %1810 = vrot.lane.b32.xlu0 %v1791, 32
    %v1811 = vpop.permute.xlu0 %1810
    %1812 = vrot.lane.b32.xlu0 %v1792, 32
    %v1813 = vpop.permute.xlu0 %1812
    %1814 = vrot.lane.b32.xlu0 %v1793, 32
    %v1815 = vpop.permute.xlu0 %1814
    %1816 = vrot.lane.b32.xlu0 %v1794, 32
    %v1817 = vpop.permute.xlu0 %1816
    %1818 = vrot.lane.b32.xlu0 %v1795, 32
    %v1819 = vpop.permute.xlu0 %1818
    %v1828 = vadd.f32 %v1748, %v1805
    %v1829 = vadd.f32 %v1749, %v1807
    %v1830 = vadd.f32 %v1750, %v1809
    %v1831 = vadd.f32 %v1751, %v1811
    %v1832 = vadd.f32 %v1752, %v1813
    %v1833 = vadd.f32 %v1753, %v1815
    %v1834 = vadd.f32 %v1754, %v1817
    %v1835 = vadd.f32 %v1755, %v1819
    %v1836 = vtanh.pop %v1828
    %v1837 = vtanh.pop %v1829
    %v1838 = vtanh.pop %v1830
    %v1839 = vtanh.pop %v1831
    %v1840 = vtanh.pop %v1832
    %v1841 = vtanh.pop %v1833
    %v1842 = vtanh.pop %v1834
    %v1843 = vtanh.pop %v1835
    %1852 = vrot.lane.b32.xlu0 %v1836, 64
    %v1853 = vpop.permute.xlu0 %1852
    %1854 = vrot.lane.b32.xlu0 %v1837, 64
    %v1855 = vpop.permute.xlu0 %1854
    %1856 = vrot.lane.b32.xlu0 %v1838, 64
    %v1857 = vpop.permute.xlu0 %1856
    %1858 = vrot.lane.b32.xlu0 %v1839, 64
    %v1859 = vpop.permute.xlu0 %1858
    %1860 = vrot.lane.b32.xlu0 %v1840, 64
    %v1861 = vpop.permute.xlu0 %1860
    %1862 = vrot.lane.b32.xlu0 %v1841, 64
    %v1863 = vpop.permute.xlu0 %1862
    %1864 = vrot.lane.b32.xlu0 %v1842, 64
    %v1865 = vpop.permute.xlu0 %1864
    %1866 = vrot.lane.b32.xlu0 %v1843, 64
    %v1867 = vpop.permute.xlu0 %1866
    %v1876 = vmul.f32 %v1732, %v1853
    %v1877 = vmul.f32 %v1733, %v1855
    %v1878 = vmul.f32 %v1734, %v1857
    %v1879 = vmul.f32 %v1735, %v1859
    %v1880 = vmul.f32 %v1736, %v1861
    %v1881 = vmul.f32 %v1737, %v1863
    %v1882 = vmul.f32 %v1738, %v1865
    %v1883 = vmul.f32 %v1739, %v1867
    %v1884 = vmul.f32 %v1876, %v402
    %v1885 = vmul.f32 %v1877, %v402
    %v1886 = vmul.f32 %v1878, %v402
    %v1887 = vmul.f32 %v1879, %v402
    %v1888 = vmul.f32 %v1880, %v402
    %v1889 = vmul.f32 %v1881, %v402
    %v1890 = vmul.f32 %v1882, %v402
    %v1891 = vmul.f32 %v1883, %v402
    %v1900 = vrot.slane %v1885, 7
    %v1901 = vsel %vm421, %v1900, %v1884
    %v1902 = vrot.slane %v1886, 6
    %v1903 = vsel %vm424, %v1902, %v1901
    %v1904 = vrot.slane %v1887, 5
    %v1905 = vsel %vm427, %v1904, %v1903
    %v1906 = vrot.slane %v1888, 4
    %v1907 = vsel %vm430, %v1906, %v1905
    %v1908 = vrot.slane %v1889, 3
    %v1909 = vsel %vm433, %v1908, %v1907
    %v1910 = vrot.slane %v1890, 2
    %v1911 = vsel %vm436, %v1910, %v1909
    %v1912 = vrot.slane %v1891, 1
    %v1913 = vsel %vm439, %v1912, %v1911
    %1914 = vrot.lane.b32.xlu0 %v1913, 32
    %v1915 = vpop.permute.xlu0 %1914
    %v1917 = vsel %vm89, %v1915, 0.0
    %1918 = vadd.xlane.f32.xlu0 %v1917
    %v1919 = vpop.xlane.xlu0 %1918
    %v1921 = vperm.slane %v1919, %v449
    %1923 = vst.msk [vmem:[#allocation3 + $0x5] sm:$0x1] %vm452, %v1921
    %v1924 = vld [vmem:[#allocation2 + $0x6] sm:$0x1]
    %v1925 = vld [vmem:[#allocation2 + $0xe] sm:$0x1]
    %v1926 = vld [vmem:[#allocation2 + $0x16] sm:$0x1]
    %v1927 = vld [vmem:[#allocation2 + $0x1e] sm:$0x1]
    %v1928 = vld [vmem:[#allocation2 + $0x26] sm:$0x1]
    %v1929 = vld [vmem:[#allocation2 + $0x2e] sm:$0x1]
    %v1930 = vld [vmem:[#allocation2 + $0x36] sm:$0x1]
    %v1931 = vld [vmem:[#allocation2 + $0x3e] sm:$0x1]
    %v1940 = vrot.slane %v1877, 7
    %v1941 = vsel %vm421, %v1940, %v1876
    %v1942 = vrot.slane %v1878, 6
    %v1943 = vsel %vm424, %v1942, %v1941
    %v1944 = vrot.slane %v1879, 5
    %v1945 = vsel %vm427, %v1944, %v1943
    %v1946 = vrot.slane %v1880, 4
    %v1947 = vsel %vm430, %v1946, %v1945
    %v1948 = vrot.slane %v1881, 3
    %v1949 = vsel %vm433, %v1948, %v1947
    %v1950 = vrot.slane %v1882, 2
    %v1951 = vsel %vm436, %v1950, %v1949
    %v1952 = vrot.slane %v1883, 1
    %v1953 = vsel %vm439, %v1952, %v1951
    %1954 = vrot.lane.b32.xlu0 %v1953, 32
    %v1955 = vpop.permute.xlu0 %1954
    %v1956 = vsel %vm89, %v1955, 0
    %1958 = vmatpush.msra.mxu0 0.0
    %1959 = vmatpush.msra.mxu0 0.0
    %1960 = vmatpush.msra.mxu0 0.0
    %1961 = vmatpush.msra.mxu0 0.0
    %1962 = vmatpush.msra.mxu0 0.0
    %1963 = vmatpush.msra.mxu0 0.0
    %1964 = vmatpush.msra.mxu0 0.0
    %1965 = vmatpush.msra.mxu0 0.0
    %1966 = vmatpush.msra.mxu0 0.0
    %1967 = vmatpush.msra.mxu0 0.0
    %1968 = vmatpush.msra.mxu0 0.0
    %1969 = vmatpush.msra.mxu0 0.0
    %1970 = vmatpush.msra.mxu0 %v166
    %1971 = vmatpush.msra.mxu0 %v165
    %1972 = vmatpush.msra.mxu0 %v164
    %1973 = vmatpush.msra.mxu0 %v163
    %1974 = vmatmul.f32.gmra.mxu0 %v1956
    %v1975 = vpop.f32.mrf.mxu0
    %v1976 = vadd.f32 0.0, %v1975
    %1977 = vdwg.mxu0
    %v1979 = vrot.slane %v1976, 1
    %v1980 = vrot.slane %v1976, 2
    %v1981 = vrot.slane %v1976, 3
    %v1982 = vrot.slane %v1976, 4
    %v1983 = vrot.slane %v1976, 5
    %v1984 = vrot.slane %v1976, 6
    %v1985 = vrot.slane %v1976, 7
    %v1994 = vadd.f32 %v1924, %v1976
    %v1995 = vadd.f32 %v1925, %v1979
    %v1996 = vadd.f32 %v1926, %v1980
    %v1997 = vadd.f32 %v1927, %v1981
    %v1998 = vadd.f32 %v1928, %v1982
    %v1999 = vadd.f32 %v1929, %v1983
    %v2000 = vadd.f32 %v1930, %v1984
    %v2001 = vadd.f32 %v1931, %v1985
    %v2002 = vmul.f32 %v1994, 0.5
    %v2003 = vmul.f32 %v1995, 0.5
    %v2004 = vmul.f32 %v1996, 0.5
    %v2005 = vmul.f32 %v1997, 0.5
    %v2006 = vmul.f32 %v1998, 0.5
    %v2007 = vmul.f32 %v1999, 0.5
    %v2008 = vmul.f32 %v2000, 0.5
    %v2009 = vmul.f32 %v2001, 0.5
    %v2010 = vtanh.pop %v2002
    %v2011 = vtanh.pop %v2003
    %v2012 = vtanh.pop %v2004
    %v2013 = vtanh.pop %v2005
    %v2014 = vtanh.pop %v2006
    %v2015 = vtanh.pop %v2007
    %v2016 = vtanh.pop %v2008
    %v2017 = vtanh.pop %v2009
    %v2018 = vadd.f32 %v2010, 1.0
    %v2019 = vadd.f32 %v2011, 1.0
    %v2020 = vadd.f32 %v2012, 1.0
    %v2021 = vadd.f32 %v2013, 1.0
    %v2022 = vadd.f32 %v2014, 1.0
    %v2023 = vadd.f32 %v2015, 1.0
    %v2024 = vadd.f32 %v2016, 1.0
    %v2025 = vadd.f32 %v2017, 1.0
    %v2026 = vmul.f32 %v2018, 0.5
    %v2027 = vmul.f32 %v2019, 0.5
    %v2028 = vmul.f32 %v2020, 0.5
    %v2029 = vmul.f32 %v2021, 0.5
    %v2030 = vmul.f32 %v2022, 0.5
    %v2031 = vmul.f32 %v2023, 0.5
    %v2032 = vmul.f32 %v2024, 0.5
    %v2033 = vmul.f32 %v2025, 0.5
    %v2034 = vtanh.pop %v1994
    %v2035 = vtanh.pop %v1995
    %v2036 = vtanh.pop %v1996
    %v2037 = vtanh.pop %v1997
    %v2038 = vtanh.pop %v1998
    %v2039 = vtanh.pop %v1999
    %v2040 = vtanh.pop %v2000
    %v2041 = vtanh.pop %v2001
    %v2042 = vmul.f32 %v2026, %v1828
    %v2043 = vmul.f32 %v2027, %v1829
    %v2044 = vmul.f32 %v2028, %v1830
    %v2045 = vmul.f32 %v2029, %v1831
    %v2046 = vmul.f32 %v2030, %v1832
    %v2047 = vmul.f32 %v2031, %v1833
    %v2048 = vmul.f32 %v2032, %v1834
    %v2049 = vmul.f32 %v2033, %v1835
    %2058 = vrot.lane.b32.xlu0 %v2034, 64
    %v2059 = vpop.permute.xlu0 %2058
    %2060 = vrot.lane.b32.xlu0 %v2035, 64
    %v2061 = vpop.permute.xlu0 %2060
    %2062 = vrot.lane.b32.xlu0 %v2036, 64
    %v2063 = vpop.permute.xlu0 %2062
    %2064 = vrot.lane.b32.xlu0 %v2037, 64
    %v2065 = vpop.permute.xlu0 %2064
    %2066 = vrot.lane.b32.xlu0 %v2038, 64
    %v2067 = vpop.permute.xlu0 %2066
    %2068 = vrot.lane.b32.xlu0 %v2039, 64
    %v2069 = vpop.permute.xlu0 %2068
    %2070 = vrot.lane.b32.xlu0 %v2040, 64
    %v2071 = vpop.permute.xlu0 %2070
    %2072 = vrot.lane.b32.xlu0 %v2041, 64
    %v2073 = vpop.permute.xlu0 %2072
    %v2082 = vmul.f32 %v2026, %v2059
    %v2083 = vmul.f32 %v2027, %v2061
    %v2084 = vmul.f32 %v2028, %v2063
    %v2085 = vmul.f32 %v2029, %v2065
    %v2086 = vmul.f32 %v2030, %v2067
    %v2087 = vmul.f32 %v2031, %v2069
    %v2088 = vmul.f32 %v2032, %v2071
    %v2089 = vmul.f32 %v2033, %v2073
    %2098 = vrot.lane.b32.xlu0 %v2082, 32
    %v2099 = vpop.permute.xlu0 %2098
    %2100 = vrot.lane.b32.xlu0 %v2083, 32
    %v2101 = vpop.permute.xlu0 %2100
    %2102 = vrot.lane.b32.xlu0 %v2084, 32
    %v2103 = vpop.permute.xlu0 %2102
    %2104 = vrot.lane.b32.xlu0 %v2085, 32
    %v2105 = vpop.permute.xlu0 %2104
    %2106 = vrot.lane.b32.xlu0 %v2086, 32
    %v2107 = vpop.permute.xlu0 %2106
    %2108 = vrot.lane.b32.xlu0 %v2087, 32
    %v2109 = vpop.permute.xlu0 %2108
    %2110 = vrot.lane.b32.xlu0 %v2088, 32
    %v2111 = vpop.permute.xlu0 %2110
    %2112 = vrot.lane.b32.xlu0 %v2089, 32
    %v2113 = vpop.permute.xlu0 %2112
    %v2122 = vadd.f32 %v2042, %v2099
    %v2123 = vadd.f32 %v2043, %v2101
    %v2124 = vadd.f32 %v2044, %v2103
    %v2125 = vadd.f32 %v2045, %v2105
    %v2126 = vadd.f32 %v2046, %v2107
    %v2127 = vadd.f32 %v2047, %v2109
    %v2128 = vadd.f32 %v2048, %v2111
    %v2129 = vadd.f32 %v2049, %v2113
    %v2130 = vtanh.pop %v2122
    %v2131 = vtanh.pop %v2123
    %v2132 = vtanh.pop %v2124
    %v2133 = vtanh.pop %v2125
    %v2134 = vtanh.pop %v2126
    %v2135 = vtanh.pop %v2127
    %v2136 = vtanh.pop %v2128
    %v2137 = vtanh.pop %v2129
    %2146 = vrot.lane.b32.xlu0 %v2130, 64
    %v2147 = vpop.permute.xlu0 %2146
    %2148 = vrot.lane.b32.xlu0 %v2131, 64
    %v2149 = vpop.permute.xlu0 %2148
    %2150 = vrot.lane.b32.xlu0 %v2132, 64
    %v2151 = vpop.permute.xlu0 %2150
    %2152 = vrot.lane.b32.xlu0 %v2133, 64
    %v2153 = vpop.permute.xlu0 %2152
    %2154 = vrot.lane.b32.xlu0 %v2134, 64
    %v2155 = vpop.permute.xlu0 %2154
    %2156 = vrot.lane.b32.xlu0 %v2135, 64
    %v2157 = vpop.permute.xlu0 %2156
    %2158 = vrot.lane.b32.xlu0 %v2136, 64
    %v2159 = vpop.permute.xlu0 %2158
    %2160 = vrot.lane.b32.xlu0 %v2137, 64
    %v2161 = vpop.permute.xlu0 %2160
    %v2170 = vmul.f32 %v2026, %v2147
    %v2171 = vmul.f32 %v2027, %v2149
    %v2172 = vmul.f32 %v2028, %v2151
    %v2173 = vmul.f32 %v2029, %v2153
    %v2174 = vmul.f32 %v2030, %v2155
    %v2175 = vmul.f32 %v2031, %v2157
    %v2176 = vmul.f32 %v2032, %v2159
    %v2177 = vmul.f32 %v2033, %v2161
    %v2178 = vmul.f32 %v2170, %v402
    %v2179 = vmul.f32 %v2171, %v402
    %v2180 = vmul.f32 %v2172, %v402
    %v2181 = vmul.f32 %v2173, %v402
    %v2182 = vmul.f32 %v2174, %v402
    %v2183 = vmul.f32 %v2175, %v402
    %v2184 = vmul.f32 %v2176, %v402
    %v2185 = vmul.f32 %v2177, %v402
    %v2194 = vrot.slane %v2179, 7
    %v2195 = vsel %vm421, %v2194, %v2178
    %v2196 = vrot.slane %v2180, 6
    %v2197 = vsel %vm424, %v2196, %v2195
    %v2198 = vrot.slane %v2181, 5
    %v2199 = vsel %vm427, %v2198, %v2197
    %v2200 = vrot.slane %v2182, 4
    %v2201 = vsel %vm430, %v2200, %v2199
    %v2202 = vrot.slane %v2183, 3
    %v2203 = vsel %vm433, %v2202, %v2201
    %v2204 = vrot.slane %v2184, 2
    %v2205 = vsel %vm436, %v2204, %v2203
    %v2206 = vrot.slane %v2185, 1
    %v2207 = vsel %vm439, %v2206, %v2205
    %2208 = vrot.lane.b32.xlu0 %v2207, 32
    %v2209 = vpop.permute.xlu0 %2208
    %v2211 = vsel %vm89, %v2209, 0.0
    %2212 = vadd.xlane.f32.xlu0 %v2211
    %v2213 = vpop.xlane.xlu0 %2212
    %v2215 = vperm.slane %v2213, %v449
    %2217 = vst.msk [vmem:[#allocation3 + $0x6] sm:$0x1] %vm452, %v2215
    %v2218 = vld [vmem:[#allocation2 + $0x7] sm:$0x1]
    %v2219 = vld [vmem:[#allocation2 + $0xf] sm:$0x1]
    %v2220 = vld [vmem:[#allocation2 + $0x17] sm:$0x1]
    %v2221 = vld [vmem:[#allocation2 + $0x1f] sm:$0x1]
    %v2222 = vld [vmem:[#allocation2 + $0x27] sm:$0x1]
    %v2223 = vld [vmem:[#allocation2 + $0x2f] sm:$0x1]
    %v2224 = vld [vmem:[#allocation2 + $0x37] sm:$0x1]
    %v2225 = vld [vmem:[#allocation2 + $0x3f] sm:$0x1]
    %v2234 = vrot.slane %v2171, 7
    %v2235 = vsel %vm421, %v2234, %v2170
    %v2236 = vrot.slane %v2172, 6
    %v2237 = vsel %vm424, %v2236, %v2235
    %v2238 = vrot.slane %v2173, 5
    %v2239 = vsel %vm427, %v2238, %v2237
    %v2240 = vrot.slane %v2174, 4
    %v2241 = vsel %vm430, %v2240, %v2239
    %v2242 = vrot.slane %v2175, 3
    %v2243 = vsel %vm433, %v2242, %v2241
    %v2244 = vrot.slane %v2176, 2
    %v2245 = vsel %vm436, %v2244, %v2243
    %v2246 = vrot.slane %v2177, 1
    %v2247 = vsel %vm439, %v2246, %v2245
    %2248 = vrot.lane.b32.xlu0 %v2247, 32
    %v2249 = vpop.permute.xlu0 %2248
    %v2250 = vsel %vm89, %v2249, 0
    %2252 = vmatpush.msra.mxu0 0.0
    %2253 = vmatpush.msra.mxu0 0.0
    %2254 = vmatpush.msra.mxu0 0.0
    %2255 = vmatpush.msra.mxu0 0.0
    %2256 = vmatpush.msra.mxu0 0.0
    %2257 = vmatpush.msra.mxu0 0.0
    %2258 = vmatpush.msra.mxu0 0.0
    %2259 = vmatpush.msra.mxu0 0.0
    %2260 = vmatpush.msra.mxu0 0.0
    %2261 = vmatpush.msra.mxu0 0.0
    %2262 = vmatpush.msra.mxu0 0.0
    %2263 = vmatpush.msra.mxu0 0.0
    %2264 = vmatpush.msra.mxu0 %v166
    %2265 = vmatpush.msra.mxu0 %v165
    %2266 = vmatpush.msra.mxu0 %v164
    %2267 = vmatpush.msra.mxu0 %v163
    %2268 = vmatmul.f32.gmra.mxu0 %v2250
    %v2269 = vpop.f32.mrf.mxu0
    %v2270 = vadd.f32 0.0, %v2269
    %2271 = vdwg.mxu0
    %v2273 = vrot.slane %v2270, 1
    %v2274 = vrot.slane %v2270, 2
    %v2275 = vrot.slane %v2270, 3
    %v2276 = vrot.slane %v2270, 4
    %v2277 = vrot.slane %v2270, 5
    %v2278 = vrot.slane %v2270, 6
    %v2279 = vrot.slane %v2270, 7
    %v2288 = vadd.f32 %v2218, %v2270
    %v2289 = vadd.f32 %v2219, %v2273
    %v2290 = vadd.f32 %v2220, %v2274
    %v2291 = vadd.f32 %v2221, %v2275
    %v2292 = vadd.f32 %v2222, %v2276
    %v2293 = vadd.f32 %v2223, %v2277
    %v2294 = vadd.f32 %v2224, %v2278
    %v2295 = vadd.f32 %v2225, %v2279
    %v2296 = vmul.f32 %v2288, 0.5
    %v2297 = vmul.f32 %v2289, 0.5
    %v2298 = vmul.f32 %v2290, 0.5
    %v2299 = vmul.f32 %v2291, 0.5
    %v2300 = vmul.f32 %v2292, 0.5
    %v2301 = vmul.f32 %v2293, 0.5
    %v2302 = vmul.f32 %v2294, 0.5
    %v2303 = vmul.f32 %v2295, 0.5
    %v2304 = vtanh.pop %v2296
    %v2305 = vtanh.pop %v2297
    %v2306 = vtanh.pop %v2298
    %v2307 = vtanh.pop %v2299
    %v2308 = vtanh.pop %v2300
    %v2309 = vtanh.pop %v2301
    %v2310 = vtanh.pop %v2302
    %v2311 = vtanh.pop %v2303
    %v2312 = vadd.f32 %v2304, 1.0
    %v2313 = vadd.f32 %v2305, 1.0
    %v2314 = vadd.f32 %v2306, 1.0
    %v2315 = vadd.f32 %v2307, 1.0
    %v2316 = vadd.f32 %v2308, 1.0
    %v2317 = vadd.f32 %v2309, 1.0
    %v2318 = vadd.f32 %v2310, 1.0
    %v2319 = vadd.f32 %v2311, 1.0
    %v2320 = vmul.f32 %v2312, 0.5
    %v2321 = vmul.f32 %v2313, 0.5
    %v2322 = vmul.f32 %v2314, 0.5
    %v2323 = vmul.f32 %v2315, 0.5
    %v2324 = vmul.f32 %v2316, 0.5
    %v2325 = vmul.f32 %v2317, 0.5
    %v2326 = vmul.f32 %v2318, 0.5
    %v2327 = vmul.f32 %v2319, 0.5
    %v2328 = vtanh.pop %v2288
    %v2329 = vtanh.pop %v2289
    %v2330 = vtanh.pop %v2290
    %v2331 = vtanh.pop %v2291
    %v2332 = vtanh.pop %v2292
    %v2333 = vtanh.pop %v2293
    %v2334 = vtanh.pop %v2294
    %v2335 = vtanh.pop %v2295
    %v2336 = vmul.f32 %v2320, %v2122
    %v2337 = vmul.f32 %v2321, %v2123
    %v2338 = vmul.f32 %v2322, %v2124
    %v2339 = vmul.f32 %v2323, %v2125
    %v2340 = vmul.f32 %v2324, %v2126
    %v2341 = vmul.f32 %v2325, %v2127
    %v2342 = vmul.f32 %v2326, %v2128
    %v2343 = vmul.f32 %v2327, %v2129
    %2352 = vrot.lane.b32.xlu0 %v2328, 64
    %v2353 = vpop.permute.xlu0 %2352
    %2354 = vrot.lane.b32.xlu0 %v2329, 64
    %v2355 = vpop.permute.xlu0 %2354
    %2356 = vrot.lane.b32.xlu0 %v2330, 64
    %v2357 = vpop.permute.xlu0 %2356
    %2358 = vrot.lane.b32.xlu0 %v2331, 64
    %v2359 = vpop.permute.xlu0 %2358
    %2360 = vrot.lane.b32.xlu0 %v2332, 64
    %v2361 = vpop.permute.xlu0 %2360
    %2362 = vrot.lane.b32.xlu0 %v2333, 64
    %v2363 = vpop.permute.xlu0 %2362
    %2364 = vrot.lane.b32.xlu0 %v2334, 64
    %v2365 = vpop.permute.xlu0 %2364
    %2366 = vrot.lane.b32.xlu0 %v2335, 64
    %v2367 = vpop.permute.xlu0 %2366
    %v2376 = vmul.f32 %v2320, %v2353
    %v2377 = vmul.f32 %v2321, %v2355
    %v2378 = vmul.f32 %v2322, %v2357
    %v2379 = vmul.f32 %v2323, %v2359
    %v2380 = vmul.f32 %v2324, %v2361
    %v2381 = vmul.f32 %v2325, %v2363
    %v2382 = vmul.f32 %v2326, %v2365
    %v2383 = vmul.f32 %v2327, %v2367
    %2392 = vrot.lane.b32.xlu0 %v2376, 32
    %v2393 = vpop.permute.xlu0 %2392
    %2394 = vrot.lane.b32.xlu0 %v2377, 32
    %v2395 = vpop.permute.xlu0 %2394
    %2396 = vrot.lane.b32.xlu0 %v2378, 32
    %v2397 = vpop.permute.xlu0 %2396
    %2398 = vrot.lane.b32.xlu0 %v2379, 32
    %v2399 = vpop.permute.xlu0 %2398
    %2400 = vrot.lane.b32.xlu0 %v2380, 32
    %v2401 = vpop.permute.xlu0 %2400
    %2402 = vrot.lane.b32.xlu0 %v2381, 32
    %v2403 = vpop.permute.xlu0 %2402
    %2404 = vrot.lane.b32.xlu0 %v2382, 32
    %v2405 = vpop.permute.xlu0 %2404
    %2406 = vrot.lane.b32.xlu0 %v2383, 32
    %v2407 = vpop.permute.xlu0 %2406
    %v2416 = vadd.f32 %v2336, %v2393
    %v2417 = vadd.f32 %v2337, %v2395
    %v2418 = vadd.f32 %v2338, %v2397
    %v2419 = vadd.f32 %v2339, %v2399
    %v2420 = vadd.f32 %v2340, %v2401
    %v2421 = vadd.f32 %v2341, %v2403
    %v2422 = vadd.f32 %v2342, %v2405
    %v2423 = vadd.f32 %v2343, %v2407
    %v2424 = vtanh.pop %v2416
    %v2425 = vtanh.pop %v2417
    %v2426 = vtanh.pop %v2418
    %v2427 = vtanh.pop %v2419
    %v2428 = vtanh.pop %v2420
    %v2429 = vtanh.pop %v2421
    %v2430 = vtanh.pop %v2422
    %v2431 = vtanh.pop %v2423
    %2440 = vrot.lane.b32.xlu0 %v2424, 64
    %v2441 = vpop.permute.xlu0 %2440
    %2442 = vrot.lane.b32.xlu0 %v2425, 64
    %v2443 = vpop.permute.xlu0 %2442
    %2444 = vrot.lane.b32.xlu0 %v2426, 64
    %v2445 = vpop.permute.xlu0 %2444
    %2446 = vrot.lane.b32.xlu0 %v2427, 64
    %v2447 = vpop.permute.xlu0 %2446
    %2448 = vrot.lane.b32.xlu0 %v2428, 64
    %v2449 = vpop.permute.xlu0 %2448
    %2450 = vrot.lane.b32.xlu0 %v2429, 64
    %v2451 = vpop.permute.xlu0 %2450
    %2452 = vrot.lane.b32.xlu0 %v2430, 64
    %v2453 = vpop.permute.xlu0 %2452
    %2454 = vrot.lane.b32.xlu0 %v2431, 64
    %v2455 = vpop.permute.xlu0 %2454
    %v2464 = vmul.f32 %v2320, %v2441
    %v2465 = vmul.f32 %v2321, %v2443
    %v2466 = vmul.f32 %v2322, %v2445
    %v2467 = vmul.f32 %v2323, %v2447
    %v2468 = vmul.f32 %v2324, %v2449
    %v2469 = vmul.f32 %v2325, %v2451
    %v2470 = vmul.f32 %v2326, %v2453
    %v2471 = vmul.f32 %v2327, %v2455
    %v2472 = vmul.f32 %v2464, %v402
    %v2473 = vmul.f32 %v2465, %v402
    %v2474 = vmul.f32 %v2466, %v402
    %v2475 = vmul.f32 %v2467, %v402
    %v2476 = vmul.f32 %v2468, %v402
    %v2477 = vmul.f32 %v2469, %v402
    %v2478 = vmul.f32 %v2470, %v402
    %v2479 = vmul.f32 %v2471, %v402
    %v2488 = vrot.slane %v2473, 7
    %v2489 = vsel %vm421, %v2488, %v2472
    %v2490 = vrot.slane %v2474, 6
    %v2491 = vsel %vm424, %v2490, %v2489
    %v2492 = vrot.slane %v2475, 5
    %v2493 = vsel %vm427, %v2492, %v2491
    %v2494 = vrot.slane %v2476, 4
    %v2495 = vsel %vm430, %v2494, %v2493
    %v2496 = vrot.slane %v2477, 3
    %v2497 = vsel %vm433, %v2496, %v2495
    %v2498 = vrot.slane %v2478, 2
    %v2499 = vsel %vm436, %v2498, %v2497
    %v2500 = vrot.slane %v2479, 1
    %v2501 = vsel %vm439, %v2500, %v2499
    %2502 = vrot.lane.b32.xlu0 %v2501, 32
    %v2503 = vpop.permute.xlu0 %2502
    %v2505 = vsel %vm89, %v2503, 0.0
    %2506 = vadd.xlane.f32.xlu0 %v2505
    %v2507 = vpop.xlane.xlu0 %2506
    %v2509 = vperm.slane %v2507, %v449
    %2511 = vst.msk [vmem:[#allocation3 + $0x7] sm:$0x1] %vm452, %v2509
    %v2512 = vld [vmem:[#allocation3] sm:$0xff]
    %2513 = vxpose.xlu0.b32.start [1/16] %v2512, 128
    %2514 = vxpose.xlu0.b32.cont [2/16] 0.0, 128
    %2515 = vxpose.xlu0.b32.cont [3/16] 0.0, 128
    %2516 = vxpose.xlu0.b32.cont [4/16] 0.0, 128
    %2517 = vxpose.xlu0.b32.cont [5/16] 0.0, 128
    %2518 = vxpose.xlu0.b32.cont [6/16] 0.0, 128
    %2519 = vxpose.xlu0.b32.cont [7/16] 0.0, 128
    %2520 = vxpose.xlu0.b32.cont [8/16] 0.0, 128
    %2521 = vxpose.xlu0.b32.cont [9/16] 0.0, 128
    %2522 = vxpose.xlu0.b32.cont [10/16] 0.0, 128
    %2523 = vxpose.xlu0.b32.cont [11/16] 0.0, 128
    %2524 = vxpose.xlu0.b32.cont [12/16] 0.0, 128
    %2525 = vxpose.xlu0.b32.cont [13/16] 0.0, 128
    %2526 = vxpose.xlu0.b32.cont [14/16] 0.0, 128
    %2527 = vxpose.xlu0.b32.cont [15/16] 0.0, 128
    %2528 = vxpose.xlu0.b32.end [16/16] 0.0, 128
    %v2529 = vpop.trf.xlu0
    %v2530 = vpop.trf.xlu0
    %v2531 = vpop.trf.xlu0
    %v2532 = vpop.trf.xlu0
    %v2533 = vpop.trf.xlu0
    %v2534 = vpop.trf.xlu0
    %v2535 = vpop.trf.xlu0
    %v2536 = vpop.trf.xlu0
    %v2537 = vpop.trf.xlu0
    %v2538 = vpop.trf.xlu0
    %v2539 = vpop.trf.xlu0
    %v2540 = vpop.trf.xlu0
    %v2541 = vpop.trf.xlu0
    %v2542 = vpop.trf.xlu0
    %v2543 = vpop.trf.xlu0
    %v2544 = vpop.trf.xlu0
    %v2545 = vld [vmem:[#allocation4] sm:$0x1]
    %v2547 = vperm.slane %v2545, 0
    %2548 = vset.pattern.permute.xlu0 0
    %2549 = vperm.xlu0 %2548, %v2547
    %v2550 = vpop.permute.xlu0 %2549
    %v2552 = vadd.f32 %v2529, %v2550
    %vm2553 = vcmask 64512
    %2554 = vst.msk [vmem:[#allocation11] sm:$0xff] %vm2553, %v2552
    // Predicated region
    $region38: #{tpu_custom_call.1} parent=1 // pred_check
      _
    $region39: #{tpu_custom_call.1} parent=1 // pred_check_branch
      %2556 = sbr.rel (0) target = $region41
    $region40: #{tpu_custom_call.1} parent=1 // pred_region
      %2558 = vsyncadd [#allocation7], 0
      %s2560 = sshll.u32 [#allocation11], 4
      %s2561 = int_to_ptr.vmem [resolvable:$true] %s2560
      %s2562 = sshll.u32 %s6, 4
      %s2563 = int_to_ptr.hbm [resolvable:$true] %s2562
      %2565 = dma.vmem_to_hbm [thread:$0]  %s2561, 128, %s2563, [#allocation7]
    $region41: #{tpu_custom_call.1} parent=1 // pred_fallthru
      _
    // Predicated region
    $region42: #{tpu_custom_call.1} parent=1 // pred_check
      _
    $region43: #{tpu_custom_call.1} parent=1 // pred_check_branch
      %2567 = sbr.rel (0) target = $region45
    $region44: #{tpu_custom_call.1} parent=1 // pred_region
      %2569 = dma.done [#allocation7], 128
    $region45: #{tpu_custom_call.1} parent=1 // pred_fallthru
      _
    %2570 = vsyncpa [#allocation6], 1
    %2571 = vsyncpa [#allocation9], 1
    %2572 = vsyncpa [#allocation7], 1

</llo_original>
